<compile_context>
chip_gen: v5e
topology: v5e:2x2
jax: 0.10.0
libtpu: 0.0.40
codegen_flags: <defaults>
</compile_context>

<pallas_src>
import functools
import math

import jax
import jax.numpy as jnp
from jax.experimental import pallas as pl
from jax.experimental.pallas import tpu as pltpu


# ----------------------------- model config ---------------------------------
class GPTConfig:
    vocab_size = 128
    block_size = 16
    n_layer = 2
    n_head = 2
    n_embd = 32


EPS = 1e-5          # nn.LayerNorm default
NEG_INF = -1e30     # causal-mask fill (attention logits stay in f32)


# ----------------------------- in-kernel helpers -----------------------------
def _layer_norm(x, g, b):
    # x: (M, C) f32; g/b: (1, C) f32
    mu = jnp.mean(x, axis=-1, keepdims=True)
    var = jnp.mean((x - mu) ** 2, axis=-1, keepdims=True)
    return (x - mu) * jax.lax.rsqrt(var + EPS) * g + b


def _gelu_tanh(x):
    # GPT-2 tanh-approximate GELU (f32 elementwise).
    c = math.sqrt(2.0 / math.pi)
    return 0.5 * x * (1.0 + jnp.tanh(c * (x + 0.044715 * x * x * x)))


# ----------------------------- fused transformer-stack kernel ----------------
def blocks_kernel(x_ref,
                  ln1_g_ref, ln1_b_ref,
                  w_q_ref, b_q_ref, w_k_ref, b_k_ref, w_v_ref, b_v_ref,
                  w_o_ref, b_o_ref,
                  ln2_g_ref, ln2_b_ref,
                  w_fc_ref, b_fc_ref, w_mp_ref, b_mp_ref,
                  out_ref,
                  *, n_head):
    # grid = (B, L); program handles one sequence (T, C) for one layer.
    layer = pl.program_id(1)

    # Layer 0: seed the resident residual stream from the embedding input.
    @pl.when(layer == 0)
    def _():
        out_ref[...] = x_ref[...]

    x = out_ref[...]                                   # (T, C) f32 residual
    T, C = x.shape

    # ---------------- attention ----------------
    h = _layer_norm(x, ln1_g_ref[...], ln1_b_ref[...])
    h_bf = h.astype(jnp.bfloat16)                      # bf16 only at MXU inputs

    row = jax.lax.broadcasted_iota(jnp.int32, (T, T), 0)
    col = jax.lax.broadcasted_iota(jnp.int32, (T, T), 1)
    causal = col <= row                                # (T, T)

    attn = jnp.zeros((T, C), jnp.float32)
    for hi in range(n_head):                           # static unroll, no lane slicing
        # w_q / b_q are pre-scaled by 1/sqrt(hd) in the wrapper.
        q = jnp.dot(h_bf, w_q_ref[hi], preferred_element_type=jnp.float32) + b_q_ref[hi]
        k = jnp.dot(h_bf, w_k_ref[hi], preferred_element_type=jnp.float32) + b_k_ref[hi]
        v = jnp.dot(h_bf, w_v_ref[hi], preferred_element_type=jnp.float32) + b_v_ref[hi]

        # scores = q @ k^T without materializing a transpose.
        att = jax.lax.dot_general(
            q.astype(jnp.bfloat16), k.astype(jnp.bfloat16),
            (((1,), (1,)), ((), ())),
            preferred_element_type=jnp.float32)        # (T, T) f32
        att = jnp.where(causal, att, NEG_INF)
        att = att - jnp.max(att, axis=-1, keepdims=True)
        p = jnp.exp(att)
        p = p * pl.reciprocal(jnp.sum(p, axis=-1, keepdims=True), approx=True)

        y = jnp.dot(p.astype(jnp.bfloat16), v.astype(jnp.bfloat16),
                    preferred_element_type=jnp.float32)            # (T, hd)
        # Fold this head straight through its slice of the output projection
        # (avoids concat + lane slicing).
        attn = attn + jnp.dot(y.astype(jnp.bfloat16), w_o_ref[hi],
                              preferred_element_type=jnp.float32)  # (T, C)

    x = x + attn + b_o_ref[...]

    # ---------------- MLP ----------------
    h2 = _layer_norm(x, ln2_g_ref[...], ln2_b_ref[...])
    fc = jnp.dot(h2.astype(jnp.bfloat16), w_fc_ref[...],
                 preferred_element_type=jnp.float32) + b_fc_ref[...]   # (T, 4C) lane-dense
    fc = _gelu_tanh(fc)
    mlp = jnp.dot(fc.astype(jnp.bfloat16), w_mp_ref[...],
                  preferred_element_type=jnp.float32) + b_mp_ref[...]  # (T, C)

    out_ref[...] = x + mlp


# ----------------------------- final ln_f + lm_head kernel -------------------
def head_kernel(x_ref, g_ref, b_ref, wte_t_ref, out_ref):
    # x: (T, C) f32; wte_t: (C, V) bf16 (pre-transposed in the wrapper)
    h = _layer_norm(x_ref[...], g_ref[...], b_ref[...])
    out_ref[...] = jnp.dot(h.astype(jnp.bfloat16), wte_t_ref[...],
                           preferred_element_type=jnp.float32)         # (T, V) lane-dense


# ----------------------------- wrappers ---------------------------------------
def run_blocks(x, kp, config):
    B, T, C = x.shape
    L, H = config.n_layer, config.n_head
    hd = C // H
    F = 4 * C

    def wspec(tail):
        nd = len(tail)
        return pl.BlockSpec((None,) + tail, lambda b, l, _nd=nd: (l,) + (0,) * _nd)

    in_specs = [
        pl.BlockSpec((None, T, C), lambda b, l: (b, 0, 0)),   # x (read at layer 0)
        wspec((1, C)), wspec((1, C)),                         # ln1 gamma, beta
        wspec((H, C, hd)), wspec((H, 1, hd)),                 # w_q, b_q
        wspec((H, C, hd)), wspec((H, 1, hd)),                 # w_k, b_k
        wspec((H, C, hd)), wspec((H, 1, hd)),                 # w_v, b_v
        wspec((H, hd, C)), wspec((1, C)),                     # w_o, b_o
        wspec((1, C)), wspec((1, C)),                         # ln2 gamma, beta
        wspec((C, F)), wspec((1, F)),                         # w_fc, b_fc
        wspec((F, C)), wspec((1, C)),                         # w_mlpproj, b_mlpproj
    ]
    out_spec = pl.BlockSpec((None, T, C), lambda b, l: (b, 0, 0))

    kern = functools.partial(blocks_kernel, n_head=H)
    return pl.pallas_call(
        kern,
        out_shape=jax.ShapeDtypeStruct((B, T, C), jnp.float32),
        grid=(B, L),
        in_specs=in_specs,
        out_specs=out_spec,
        compiler_params=pltpu.CompilerParams(
            dimension_semantics=("parallel", "arbitrary")),
    )(x,
      kp['ln1_g'], kp['ln1_b'],
      kp['w_q'], kp['b_q'], kp['w_k'], kp['b_k'], kp['w_v'], kp['b_v'],
      kp['w_o'], kp['b_o'],
      kp['ln2_g'], kp['ln2_b'],
      kp['w_fc'], kp['b_fc'], kp['w_mp'], kp['b_mp'])


def run_head(x, lnf_g, lnf_b, wte_t):
    B, T, C = x.shape
    V = wte_t.shape[1]
    # TODO(synk): for realistic vocab sizes (50k), tile V into 128-512 wide
    # blocks with an extra "parallel" grid axis to respect v7x's 64 MiB VMEM.
    return pl.pallas_call(
        head_kernel,
        out_shape=jax.ShapeDtypeStruct((B, T, V), jnp.float32),
        grid=(B,),
        in_specs=[
            pl.BlockSpec((None, T, C), lambda b: (b, 0, 0)),
            pl.BlockSpec((1, C), lambda b: (0, 0)),
            pl.BlockSpec((1, C), lambda b: (0, 0)),
            pl.BlockSpec((C, V), lambda b: (0, 0)),
        ],
        out_specs=pl.BlockSpec((None, T, V), lambda b: (b, 0, 0)),
        compiler_params=pltpu.CompilerParams(
            dimension_semantics=("parallel",)),
    )(x, lnf_g, lnf_b, wte_t)


def gpt_forward(idx, params, kparams, config, targets=None):
    B, T = idx.shape
    assert T <= config.block_size
    # Embedding lookups (plain-JAX glue; gather has no clean Pallas equivalent here).
    tok_emb = params['wte'][idx]                     # (B, T, C)
    pos_emb = params['wpe'][:T]                      # (T, C)
    x = (tok_emb + pos_emb[None, :, :]).astype(jnp.float32)

    x = run_blocks(x, kparams, config)               # fused L-layer stack
    logits = run_head(x, kparams['lnf_g'], kparams['lnf_b'], kparams['wte_t'])

    loss = None
    if targets is not None:
        logp = jax.nn.log_softmax(logits.reshape(-1, logits.shape[-1]), axis=-1)
        loss = -jnp.mean(jnp.take_along_axis(logp, targets.reshape(-1, 1), axis=-1))
    return logits, loss


# ----------------------------- param prep -------------------------------------
def prepare_kernel_params(params, config):
    """One-time wrapper-side restructuring: stack per-layer weights along L,
    split QKV per head (no in-kernel lane slicing), fold 1/sqrt(hd) into Q,
    pre-transpose wte, cast matmul weights to bf16."""
    C, H, L = config.n_embd, config.n_head, config.n_layer
    hd = C // H
    F = 4 * C
    scale = 1.0 / math.sqrt(hd)
    bf16 = jnp.bfloat16

    def stack(name):
        return jnp.stack([blk[name] for blk in params['blocks']], axis=0)

    w_qkv = stack('w_qkv')                       # (L, C, 3C)
    b_qkv = stack('b_qkv')                       # (L, 3C)

    def split_w(w):                              # (L, C, C) -> (L, H, C, hd)
        return w.reshape(L, C, H, hd).transpose(0, 2, 1, 3)

    def split_b(b):                              # (L, C) -> (L, H, 1, hd)
        return b.reshape(L, H, 1, hd)

    kp = dict(
        ln1_g=stack('ln1_g').reshape(L, 1, C),
        ln1_b=stack('ln1_b').reshape(L, 1, C),
        w_q=(split_w(w_qkv[:, :, 0 * C:1 * C]) * scale).astype(bf16),
        b_q=split_b(b_qkv[:, 0 * C:1 * C]) * scale,
        w_k=split_w(w_qkv[:, :, 1 * C:2 * C]).astype(bf16),
        b_k=split_b(b_qkv[:, 1 * C:2 * C]),
        w_v=split_w(w_qkv[:, :, 2 * C:3 * C]).astype(bf16),
        b_v=split_b(b_qkv[:, 2 * C:3 * C]),
        w_o=stack('w_attnproj').reshape(L, H, hd, C).astype(bf16),
        b_o=stack('b_attnproj').reshape(L, 1, C),
        ln2_g=stack('ln2_g').reshape(L, 1, C),
        ln2_b=stack('ln2_b').reshape(L, 1, C),
        w_fc=stack('w_fc').astype(bf16),                       # (L, C, 4C)
        b_fc=stack('b_fc').reshape(L, 1, F),
        w_mp=stack('w_mlpproj').astype(bf16),                  # (L, 4C, C)
        b_mp=stack('b_mlpproj').reshape(L, 1, C),
        lnf_g=params['lnf_g'].reshape(1, C),
        lnf_b=params['lnf_b'].reshape(1, C),
        wte_t=params['wte'].T.astype(bf16),                    # (C, V), tied lm_head
    )
    return kp


# ----------------------------- deterministic init -----------------------------
def init_params(config, key):
    C, V, L = config.n_embd, config.vocab_size, config.n_layer
    std = 0.02
    std_proj = 0.02 * (2 * L) ** -0.5   # NANOGPT_SCALE_INIT for residual projections

    keys = iter(jax.random.split(key, 4 + 8 * L))
    params = {
        # wte is tied with lm_head (nn.Linear init -> std=0.02)
        'wte': jax.random.normal(next(keys), (V, C), jnp.float32) * std,
        'wpe': jax.random.normal(next(keys), (config.block_size, C), jnp.float32) * 0.2,
        'lnf_g': jnp.ones((C,), jnp.float32),
        'lnf_b': jnp.zeros((C,), jnp.float32),
        'blocks': [],
    }
    for _ in range(L):
        blk = dict(
            ln1_g=jnp.ones((C,), jnp.float32),
            ln1_b=jnp.zeros((C,), jnp.float32),
            w_qkv=jax.random.normal(next(keys), (C, 3 * C), jnp.float32) * std,
            b_qkv=jnp.zeros((3 * C,), jnp.float32),
            w_attnproj=jax.random.normal(next(keys), (C, C), jnp.float32) * std_proj,
            b_attnproj=jnp.zeros((C,), jnp.float32),
            ln2_g=jnp.ones((C,), jnp.float32),
            ln2_b=jnp.zeros((C,), jnp.float32),
            w_fc=jax.random.normal(next(keys), (C, 4 * C), jnp.float32) * std,
            b_fc=jnp.zeros((4 * C,), jnp.float32),
            w_mlpproj=jax.random.normal(next(keys), (4 * C, C), jnp.float32) * std_proj,
            b_mlpproj=jnp.zeros((C,), jnp.float32),
        )
        params['blocks'].append(blk)
    return params


# ----------------------------- main -------------------------------------------
if __name__ == "__main__":
    config = GPTConfig()
    key = jax.random.PRNGKey(0)
    pkey, ikey = jax.random.split(key)

    params = init_params(config, pkey)
    kparams = prepare_kernel_params(params, config)

    B, T = 2, 8
    idx = jax.random.randint(ikey, (B, T), 0, config.vocab_size, dtype=jnp.int32)

    logits, loss = gpt_forward(idx, params, kparams, config, targets=None)
    jax.block_until_ready(logits)

    assert logits.shape == (B, T, config.vocab_size)
    assert logits.dtype == jnp.float32
    print("KERNEL_OK")
</pallas_src>

<mosaic_0001>
module attributes {stable_mosaic.version = 11 : i64} {
  func.func @blocks_kernel(%arg0: i32, %arg1: i32, %arg2: memref<1x8x32xf32, #tpu.memory_space<vmem>>, %arg3: memref<1x1x32xf32, #tpu.memory_space<vmem>>, %arg4: memref<1x1x32xf32, #tpu.memory_space<vmem>>, %arg5: memref<1x2x32x16xbf16, #tpu.memory_space<vmem>>, %arg6: memref<1x2x1x16xf32, #tpu.memory_space<vmem>>, %arg7: memref<1x2x32x16xbf16, #tpu.memory_space<vmem>>, %arg8: memref<1x2x1x16xf32, #tpu.memory_space<vmem>>, %arg9: memref<1x2x32x16xbf16, #tpu.memory_space<vmem>>, %arg10: memref<1x2x1x16xf32, #tpu.memory_space<vmem>>, %arg11: memref<1x2x16x32xbf16, #tpu.memory_space<vmem>>, %arg12: memref<1x1x32xf32, #tpu.memory_space<vmem>>, %arg13: memref<1x1x32xf32, #tpu.memory_space<vmem>>, %arg14: memref<1x1x32xf32, #tpu.memory_space<vmem>>, %arg15: memref<1x32x128xbf16, #tpu.memory_space<vmem>>, %arg16: memref<1x1x128xf32, #tpu.memory_space<vmem>>, %arg17: memref<1x128x32xbf16, #tpu.memory_space<vmem>>, %arg18: memref<1x1x32xf32, #tpu.memory_space<vmem>>, %arg19: memref<1x8x32xf32, #tpu.memory_space<vmem>>) attributes {dimension_semantics = [#tpu.dimension_semantics<parallel>, #tpu.dimension_semantics<arbitrary>], iteration_bounds = array<i64: 2, 2>, scalar_prefetch = 0 : i64, scratch_operands = 0 : i64, tpu.core_type = #tpu.core_type<tc>, window_params = [{transform_indices = @transform_0, window_bounds = array<i64: 1, 8, 32>}, {transform_indices = @transform_1, window_bounds = array<i64: 1, 1, 32>}, {transform_indices = @transform_2, window_bounds = array<i64: 1, 1, 32>}, {transform_indices = @transform_3, window_bounds = array<i64: 1, 2, 32, 16>}, {transform_indices = @transform_4, window_bounds = array<i64: 1, 2, 1, 16>}, {transform_indices = @transform_5, window_bounds = array<i64: 1, 2, 32, 16>}, {transform_indices = @transform_6, window_bounds = array<i64: 1, 2, 1, 16>}, {transform_indices = @transform_7, window_bounds = array<i64: 1, 2, 32, 16>}, {transform_indices = @transform_8, window_bounds = array<i64: 1, 2, 1, 16>}, {transform_indices = @transform_9, window_bounds = array<i64: 1, 2, 16, 32>}, {transform_indices = @transform_10, window_bounds = array<i64: 1, 1, 32>}, {transform_indices = @transform_11, window_bounds = array<i64: 1, 1, 32>}, {transform_indices = @transform_12, window_bounds = array<i64: 1, 1, 32>}, {transform_indices = @transform_13, window_bounds = array<i64: 1, 32, 128>}, {transform_indices = @transform_14, window_bounds = array<i64: 1, 1, 128>}, {transform_indices = @transform_15, window_bounds = array<i64: 1, 128, 32>}, {transform_indices = @transform_16, window_bounds = array<i64: 1, 1, 32>}, {transform_indices = @transform_17, window_bounds = array<i64: 1, 8, 32>}]} {
    %c0_i32 = arith.constant 0 : i32
    %0 = arith.cmpi eq, %arg1, %c0_i32 : i32
    %1 = arith.extui %0 : i1 to i32
    %c0_i32_0 = arith.constant 0 : i32
    %2 = arith.cmpi ne, %1, %c0_i32_0 : i32
    scf.if %2 {
      %c0_122 = arith.constant 0 : index
      %c0_123 = arith.constant 0 : index
      %c0_124 = arith.constant 0 : index
      %188 = vector.load %arg2[%c0_122, %c0_123, %c0_124] : memref<1x8x32xf32, #tpu.memory_space<vmem>>, vector<1x8x32xf32>
      %189 = vector.shape_cast %188 : vector<1x8x32xf32> to vector<8x32xf32>
      %c0_125 = arith.constant 0 : index
      %c0_126 = arith.constant 0 : index
      %c0_127 = arith.constant 0 : index
      %190 = vector.load %arg19[%c0_125, %c0_126, %c0_127] : memref<1x8x32xf32, #tpu.memory_space<vmem>>, vector<1x8x32xf32>
      %191 = vector.shape_cast %190 : vector<1x8x32xf32> to vector<8x32xf32>
      %192 = vector.shape_cast %189 : vector<8x32xf32> to vector<1x8x32xf32>
      tpu.vector_store %arg19[%c0_125, %c0_126, %c0_127], %192 {strides = array<i32>} : memref<1x8x32xf32, #tpu.memory_space<vmem>>, vector<1x8x32xf32>,
    } else {
    }
    %c0 = arith.constant 0 : index
    %c0_1 = arith.constant 0 : index
    %c0_2 = arith.constant 0 : index
    %3 = vector.load %arg19[%c0, %c0_1, %c0_2] : memref<1x8x32xf32, #tpu.memory_space<vmem>>, vector<1x8x32xf32>
    %4 = vector.shape_cast %3 : vector<1x8x32xf32> to vector<8x32xf32>
    %c0_3 = arith.constant 0 : index
    %c0_4 = arith.constant 0 : index
    %c0_5 = arith.constant 0 : index
    %5 = vector.load %arg3[%c0_3, %c0_4, %c0_5] : memref<1x1x32xf32, #tpu.memory_space<vmem>>, vector<1x1x32xf32>
    %6 = vector.shape_cast %5 : vector<1x1x32xf32> to vector<1x32xf32>
    %c0_6 = arith.constant 0 : index
    %c0_7 = arith.constant 0 : index
    %c0_8 = arith.constant 0 : index
    %7 = vector.load %arg4[%c0_6, %c0_7, %c0_8] : memref<1x1x32xf32, #tpu.memory_space<vmem>>, vector<1x1x32xf32>
    %8 = vector.shape_cast %7 : vector<1x1x32xf32> to vector<1x32xf32>
    %cst = arith.constant dense<0.000000e+00> : vector<8xf32>
    %9 = vector.multi_reduction <add>, %4, %cst [1] : vector<8x32xf32> to vector<8xf32>
    %10 = vector.shape_cast %9 : vector<8xf32> to vector<8x1xf32>
    %cst_9 = arith.constant 3.200000e+01 : f32
    %11 = vector.broadcast %cst_9 : f32 to vector<8x1xf32>
    %12 = arith.divf %10, %11 : vector<8x1xf32>
    %13 = vector.broadcast %12 : vector<8x1xf32> to vector<8x32xf32>
    %14 = arith.subf %4, %13 : vector<8x32xf32>
    %15 = arith.mulf %14, %14 : vector<8x32xf32>
    %cst_10 = arith.constant dense<0.000000e+00> : vector<8xf32>
    %16 = vector.multi_reduction <add>, %15, %cst_10 [1] : vector<8x32xf32> to vector<8xf32>
    %17 = vector.shape_cast %16 : vector<8xf32> to vector<8x1xf32>
    %cst_11 = arith.constant 3.200000e+01 : f32
    %18 = vector.broadcast %cst_11 : f32 to vector<8x1xf32>
    %19 = arith.divf %17, %18 : vector<8x1xf32>
    %20 = vector.broadcast %12 : vector<8x1xf32> to vector<8x32xf32>
    %21 = arith.subf %4, %20 : vector<8x32xf32>
    %cst_12 = arith.constant 9.99999974E-6 : f32
    %22 = vector.broadcast %cst_12 : f32 to vector<8x1xf32>
    %23 = arith.addf %19, %22 : vector<8x1xf32>
    %24 = math.rsqrt %23 : vector<8x1xf32>
    %25 = vector.broadcast %24 : vector<8x1xf32> to vector<8x32xf32>
    %26 = arith.mulf %21, %25 : vector<8x32xf32>
    %27 = vector.broadcast %6 : vector<1x32xf32> to vector<8x32xf32>
    %28 = arith.mulf %26, %27 : vector<8x32xf32>
    %29 = vector.broadcast %8 : vector<1x32xf32> to vector<8x32xf32>
    %30 = arith.addf %28, %29 : vector<8x32xf32>
    %31 = arith.truncf %30 : vector<8x32xf32> to vector<8x32xbf16>
    %32 = tpu.iota {dimensions = array<i32: 0>} : vector<8x8xi32>
    %33 = tpu.iota {dimensions = array<i32: 1>} : vector<8x8xi32>
    %34 = arith.cmpi sle, %33, %32 : vector<8x8xi32>
    %cst_13 = arith.constant 0.000000e+00 : f32
    %35 = vector.broadcast %cst_13 : f32 to vector<8x32xf32>
    %c0_14 = arith.constant 0 : index
    %c0_15 = arith.constant 0 : index
    %c0_16 = arith.constant 0 : index
    %c0_17 = arith.constant 0 : index
    %36 = vector.load %arg5[%c0_14, %c0_15, %c0_16, %c0_17] : memref<1x2x32x16xbf16, #tpu.memory_space<vmem>>, vector<1x1x32x16xbf16>
    %37 = vector.shape_cast %36 : vector<1x1x32x16xbf16> to vector<32x16xbf16>
    %cst_18 = arith.constant dense<0.000000e+00> : vector<8x16xf32>
    %38 = tpu.matmul %31, %37, %cst_18 {dimension_numbers = #tpu.dot_dimension_numbers<[1], [0], [0], [1], [0, 0, 1, 1], [], []>} : vector<8x32xbf16>, vector<32x16xbf16>, vector<8x16xf32> -> vector<8x16xf32>
    %c0_19 = arith.constant 0 : index
    %c0_20 = arith.constant 0 : index
    %c0_21 = arith.constant 0 : index
    %c0_22 = arith.constant 0 : index
    %39 = vector.load %arg6[%c0_19, %c0_20, %c0_21, %c0_22] : memref<1x2x1x16xf32, #tpu.memory_space<vmem>>, vector<1x1x1x16xf32>
    %40 = vector.shape_cast %39 : vector<1x1x1x16xf32> to vector<1x16xf32>
    %41 = vector.broadcast %40 : vector<1x16xf32> to vector<8x16xf32>
    %42 = arith.addf %38, %41 : vector<8x16xf32>
    %c0_23 = arith.constant 0 : index
    %c0_24 = arith.constant 0 : index
    %c0_25 = arith.constant 0 : index
    %c0_26 = arith.constant 0 : index
    %43 = vector.load %arg7[%c0_23, %c0_24, %c0_25, %c0_26] : memref<1x2x32x16xbf16, #tpu.memory_space<vmem>>, vector<1x1x32x16xbf16>
    %44 = vector.shape_cast %43 : vector<1x1x32x16xbf16> to vector<32x16xbf16>
    %cst_27 = arith.constant dense<0.000000e+00> : vector<8x16xf32>
    %45 = tpu.matmul %31, %44, %cst_27 {dimension_numbers = #tpu.dot_dimension_numbers<[1], [0], [0], [1], [0, 0, 1, 1], [], []>} : vector<8x32xbf16>, vector<32x16xbf16>, vector<8x16xf32> -> vector<8x16xf32>
    %c0_28 = arith.constant 0 : index
    %c0_29 = arith.constant 0 : index
    %c0_30 = arith.constant 0 : index
    %c0_31 = arith.constant 0 : index
    %46 = vector.load %arg8[%c0_28, %c0_29, %c0_30, %c0_31] : memref<1x2x1x16xf32, #tpu.memory_space<vmem>>, vector<1x1x1x16xf32>
    %47 = vector.shape_cast %46 : vector<1x1x1x16xf32> to vector<1x16xf32>
    %48 = vector.broadcast %47 : vector<1x16xf32> to vector<8x16xf32>
    %49 = arith.addf %45, %48 : vector<8x16xf32>
    %c0_32 = arith.constant 0 : index
    %c0_33 = arith.constant 0 : index
    %c0_34 = arith.constant 0 : index
    %c0_35 = arith.constant 0 : index
    %50 = vector.load %arg9[%c0_32, %c0_33, %c0_34, %c0_35] : memref<1x2x32x16xbf16, #tpu.memory_space<vmem>>, vector<1x1x32x16xbf16>
    %51 = vector.shape_cast %50 : vector<1x1x32x16xbf16> to vector<32x16xbf16>
    %cst_36 = arith.constant dense<0.000000e+00> : vector<8x16xf32>
    %52 = tpu.matmul %31, %51, %cst_36 {dimension_numbers = #tpu.dot_dimension_numbers<[1], [0], [0], [1], [0, 0, 1, 1], [], []>} : vector<8x32xbf16>, vector<32x16xbf16>, vector<8x16xf32> -> vector<8x16xf32>
    %c0_37 = arith.constant 0 : index
    %c0_38 = arith.constant 0 : index
    %c0_39 = arith.constant 0 : index
    %c0_40 = arith.constant 0 : index
    %53 = vector.load %arg10[%c0_37, %c0_38, %c0_39, %c0_40] : memref<1x2x1x16xf32, #tpu.memory_space<vmem>>, vector<1x1x1x16xf32>
    %54 = vector.shape_cast %53 : vector<1x1x1x16xf32> to vector<1x16xf32>
    %55 = vector.broadcast %54 : vector<1x16xf32> to vector<8x16xf32>
    %56 = arith.addf %52, %55 : vector<8x16xf32>
    %57 = arith.truncf %42 : vector<8x16xf32> to vector<8x16xbf16>
    %58 = arith.truncf %49 : vector<8x16xf32> to vector<8x16xbf16>
    %cst_41 = arith.constant dense<0.000000e+00> : vector<8x8xf32>
    %59 = tpu.matmul %57, %58, %cst_41 {dimension_numbers = #tpu.dot_dimension_numbers<[1], [1], [0], [0], [0, 0, 1, 0], [], []>} : vector<8x16xbf16>, vector<8x16xbf16>, vector<8x8xf32> -> vector<8x8xf32>
    %cst_42 = arith.constant -1.000000e+30 : f32
    %60 = vector.broadcast %cst_42 : f32 to vector<8x8xf32>
    %61 = arith.select %34, %59, %60 : vector<8x8xi1>, vector<8x8xf32>
    %cst_43 = arith.constant dense<0xFF800000> : vector<8xf32>
    %62 = vector.multi_reduction <maximumf>, %61, %cst_43 [1] : vector<8x8xf32> to vector<8xf32>
    %63 = vector.shape_cast %62 : vector<8xf32> to vector<8x1xf32>
    %64 = vector.broadcast %63 : vector<8x1xf32> to vector<8x8xf32>
    %65 = arith.subf %61, %64 : vector<8x8xf32>
    %66 = math.exp %65 : vector<8x8xf32>
    %cst_44 = arith.constant dense<0.000000e+00> : vector<8xf32>
    %67 = vector.multi_reduction <add>, %66, %cst_44 [1] : vector<8x8xf32> to vector<8xf32>
    %68 = vector.shape_cast %67 : vector<8xf32> to vector<8x1xf32>
    %69 = tpu.reciprocal %68 {approx = true} : vector<8x1xf32> -> vector<8x1xf32>
    %70 = vector.broadcast %69 : vector<8x1xf32> to vector<8x8xf32>
    %71 = arith.mulf %66, %70 : vector<8x8xf32>
    %72 = arith.truncf %71 : vector<8x8xf32> to vector<8x8xbf16>
    %73 = arith.truncf %56 : vector<8x16xf32> to vector<8x16xbf16>
    %cst_45 = arith.constant dense<0.000000e+00> : vector<8x16xf32>
    %74 = tpu.matmul %72, %73, %cst_45 {dimension_numbers = #tpu.dot_dimension_numbers<[1], [0], [0], [1], [0, 0, 1, 1], [], []>} : vector<8x8xbf16>, vector<8x16xbf16>, vector<8x16xf32> -> vector<8x16xf32>
    %75 = arith.truncf %74 : vector<8x16xf32> to vector<8x16xbf16>
    %c0_46 = arith.constant 0 : index
    %c0_47 = arith.constant 0 : index
    %c0_48 = arith.constant 0 : index
    %c0_49 = arith.constant 0 : index
    %76 = vector.load %arg11[%c0_46, %c0_47, %c0_48, %c0_49] : memref<1x2x16x32xbf16, #tpu.memory_space<vmem>>, vector<1x1x16x32xbf16>
    %77 = vector.shape_cast %76 : vector<1x1x16x32xbf16> to vector<16x32xbf16>
    %cst_50 = arith.constant dense<0.000000e+00> : vector<8x32xf32>
    %78 = tpu.matmul %75, %77, %cst_50 {dimension_numbers = #tpu.dot_dimension_numbers<[1], [0], [0], [1], [0, 0, 1, 1], [], []>} : vector<8x16xbf16>, vector<16x32xbf16>, vector<8x32xf32> -> vector<8x32xf32>
    %79 = arith.addf %35, %78 : vector<8x32xf32>
    %c0_51 = arith.constant 0 : index
    %c1 = arith.constant 1 : index
    %c0_52 = arith.constant 0 : index
    %c0_53 = arith.constant 0 : index
    %80 = vector.load %arg5[%c0_51, %c1, %c0_52, %c0_53] : memref<1x2x32x16xbf16, #tpu.memory_space<vmem>>, vector<1x1x32x16xbf16>
    %81 = vector.shape_cast %80 : vector<1x1x32x16xbf16> to vector<32x16xbf16>
    %cst_54 = arith.constant dense<0.000000e+00> : vector<8x16xf32>
    %82 = tpu.matmul %31, %81, %cst_54 {dimension_numbers = #tpu.dot_dimension_numbers<[1], [0], [0], [1], [0, 0, 1, 1], [], []>} : vector<8x32xbf16>, vector<32x16xbf16>, vector<8x16xf32> -> vector<8x16xf32>
    %c0_55 = arith.constant 0 : index
    %c1_56 = arith.constant 1 : index
    %c0_57 = arith.constant 0 : index
    %c0_58 = arith.constant 0 : index
    %83 = vector.load %arg6[%c0_55, %c1_56, %c0_57, %c0_58] : memref<1x2x1x16xf32, #tpu.memory_space<vmem>>, vector<1x1x1x16xf32>
    %84 = vector.shape_cast %83 : vector<1x1x1x16xf32> to vector<1x16xf32>
    %85 = vector.broadcast %84 : vector<1x16xf32> to vector<8x16xf32>
    %86 = arith.addf %82, %85 : vector<8x16xf32>
    %c0_59 = arith.constant 0 : index
    %c1_60 = arith.constant 1 : index
    %c0_61 = arith.constant 0 : index
    %c0_62 = arith.constant 0 : index
    %87 = vector.load %arg7[%c0_59, %c1_60, %c0_61, %c0_62] : memref<1x2x32x16xbf16, #tpu.memory_space<vmem>>, vector<1x1x32x16xbf16>
    %88 = vector.shape_cast %87 : vector<1x1x32x16xbf16> to vector<32x16xbf16>
    %cst_63 = arith.constant dense<0.000000e+00> : vector<8x16xf32>
    %89 = tpu.matmul %31, %88, %cst_63 {dimension_numbers = #tpu.dot_dimension_numbers<[1], [0], [0], [1], [0, 0, 1, 1], [], []>} : vector<8x32xbf16>, vector<32x16xbf16>, vector<8x16xf32> -> vector<8x16xf32>
    %c0_64 = arith.constant 0 : index
    %c1_65 = arith.constant 1 : index
    %c0_66 = arith.constant 0 : index
    %c0_67 = arith.constant 0 : index
    %90 = vector.load %arg8[%c0_64, %c1_65, %c0_66, %c0_67] : memref<1x2x1x16xf32, #tpu.memory_space<vmem>>, vector<1x1x1x16xf32>
    %91 = vector.shape_cast %90 : vector<1x1x1x16xf32> to vector<1x16xf32>
    %92 = vector.broadcast %91 : vector<1x16xf32> to vector<8x16xf32>
    %93 = arith.addf %89, %92 : vector<8x16xf32>
    %c0_68 = arith.constant 0 : index
    %c1_69 = arith.constant 1 : index
    %c0_70 = arith.constant 0 : index
    %c0_71 = arith.constant 0 : index
    %94 = vector.load %arg9[%c0_68, %c1_69, %c0_70, %c0_71] : memref<1x2x32x16xbf16, #tpu.memory_space<vmem>>, vector<1x1x32x16xbf16>
    %95 = vector.shape_cast %94 : vector<1x1x32x16xbf16> to vector<32x16xbf16>
    %cst_72 = arith.constant dense<0.000000e+00> : vector<8x16xf32>
    %96 = tpu.matmul %31, %95, %cst_72 {dimension_numbers = #tpu.dot_dimension_numbers<[1], [0], [0], [1], [0, 0, 1, 1], [], []>} : vector<8x32xbf16>, vector<32x16xbf16>, vector<8x16xf32> -> vector<8x16xf32>
    %c0_73 = arith.constant 0 : index
    %c1_74 = arith.constant 1 : index
    %c0_75 = arith.constant 0 : index
    %c0_76 = arith.constant 0 : index
    %97 = vector.load %arg10[%c0_73, %c1_74, %c0_75, %c0_76] : memref<1x2x1x16xf32, #tpu.memory_space<vmem>>, vector<1x1x1x16xf32>
    %98 = vector.shape_cast %97 : vector<1x1x1x16xf32> to vector<1x16xf32>
    %99 = vector.broadcast %98 : vector<1x16xf32> to vector<8x16xf32>
    %100 = arith.addf %96, %99 : vector<8x16xf32>
    %101 = arith.truncf %86 : vector<8x16xf32> to vector<8x16xbf16>
    %102 = arith.truncf %93 : vector<8x16xf32> to vector<8x16xbf16>
    %cst_77 = arith.constant dense<0.000000e+00> : vector<8x8xf32>
    %103 = tpu.matmul %101, %102, %cst_77 {dimension_numbers = #tpu.dot_dimension_numbers<[1], [1], [0], [0], [0, 0, 1, 0], [], []>} : vector<8x16xbf16>, vector<8x16xbf16>, vector<8x8xf32> -> vector<8x8xf32>
    %cst_78 = arith.constant -1.000000e+30 : f32
    %104 = vector.broadcast %cst_78 : f32 to vector<8x8xf32>
    %105 = arith.select %34, %103, %104 : vector<8x8xi1>, vector<8x8xf32>
    %cst_79 = arith.constant dense<0xFF800000> : vector<8xf32>
    %106 = vector.multi_reduction <maximumf>, %105, %cst_79 [1] : vector<8x8xf32> to vector<8xf32>
    %107 = vector.shape_cast %106 : vector<8xf32> to vector<8x1xf32>
    %108 = vector.broadcast %107 : vector<8x1xf32> to vector<8x8xf32>
    %109 = arith.subf %105, %108 : vector<8x8xf32>
    %110 = math.exp %109 : vector<8x8xf32>
    %cst_80 = arith.constant dense<0.000000e+00> : vector<8xf32>
    %111 = vector.multi_reduction <add>, %110, %cst_80 [1] : vector<8x8xf32> to vector<8xf32>
    %112 = vector.shape_cast %111 : vector<8xf32> to vector<8x1xf32>
    %113 = tpu.reciprocal %112 {approx = true} : vector<8x1xf32> -> vector<8x1xf32>
    %114 = vector.broadcast %113 : vector<8x1xf32> to vector<8x8xf32>
    %115 = arith.mulf %110, %114 : vector<8x8xf32>
    %116 = arith.truncf %115 : vector<8x8xf32> to vector<8x8xbf16>
    %117 = arith.truncf %100 : vector<8x16xf32> to vector<8x16xbf16>
    %cst_81 = arith.constant dense<0.000000e+00> : vector<8x16xf32>
    %118 = tpu.matmul %116, %117, %cst_81 {dimension_numbers = #tpu.dot_dimension_numbers<[1], [0], [0], [1], [0, 0, 1, 1], [], []>} : vector<8x8xbf16>, vector<8x16xbf16>, vector<8x16xf32> -> vector<8x16xf32>
    %119 = arith.truncf %118 : vector<8x16xf32> to vector<8x16xbf16>
    %c0_82 = arith.constant 0 : index
    %c1_83 = arith.constant 1 : index
    %c0_84 = arith.constant 0 : index
    %c0_85 = arith.constant 0 : index
    %120 = vector.load %arg11[%c0_82, %c1_83, %c0_84, %c0_85] : memref<1x2x16x32xbf16, #tpu.memory_space<vmem>>, vector<1x1x16x32xbf16>
    %121 = vector.shape_cast %120 : vector<1x1x16x32xbf16> to vector<16x32xbf16>
    %cst_86 = arith.constant dense<0.000000e+00> : vector<8x32xf32>
    %122 = tpu.matmul %119, %121, %cst_86 {dimension_numbers = #tpu.dot_dimension_numbers<[1], [0], [0], [1], [0, 0, 1, 1], [], []>} : vector<8x16xbf16>, vector<16x32xbf16>, vector<8x32xf32> -> vector<8x32xf32>
    %123 = arith.addf %79, %122 : vector<8x32xf32>
    %124 = arith.addf %4, %123 : vector<8x32xf32>
    %c0_87 = arith.constant 0 : index
    %c0_88 = arith.constant 0 : index
    %c0_89 = arith.constant 0 : index
    %125 = vector.load %arg12[%c0_87, %c0_88, %c0_89] : memref<1x1x32xf32, #tpu.memory_space<vmem>>, vector<1x1x32xf32>
    %126 = vector.shape_cast %125 : vector<1x1x32xf32> to vector<1x32xf32>
    %127 = vector.broadcast %126 : vector<1x32xf32> to vector<8x32xf32>
    %128 = arith.addf %124, %127 : vector<8x32xf32>
    %c0_90 = arith.constant 0 : index
    %c0_91 = arith.constant 0 : index
    %c0_92 = arith.constant 0 : index
    %129 = vector.load %arg13[%c0_90, %c0_91, %c0_92] : memref<1x1x32xf32, #tpu.memory_space<vmem>>, vector<1x1x32xf32>
    %130 = vector.shape_cast %129 : vector<1x1x32xf32> to vector<1x32xf32>
    %c0_93 = arith.constant 0 : index
    %c0_94 = arith.constant 0 : index
    %c0_95 = arith.constant 0 : index
    %131 = vector.load %arg14[%c0_93, %c0_94, %c0_95] : memref<1x1x32xf32, #tpu.memory_space<vmem>>, vector<1x1x32xf32>
    %132 = vector.shape_cast %131 : vector<1x1x32xf32> to vector<1x32xf32>
    %cst_96 = arith.constant dense<0.000000e+00> : vector<8xf32>
    %133 = vector.multi_reduction <add>, %128, %cst_96 [1] : vector<8x32xf32> to vector<8xf32>
    %134 = vector.shape_cast %133 : vector<8xf32> to vector<8x1xf32>
    %cst_97 = arith.constant 3.200000e+01 : f32
    %135 = vector.broadcast %cst_97 : f32 to vector<8x1xf32>
    %136 = arith.divf %134, %135 : vector<8x1xf32>
    %137 = vector.broadcast %136 : vector<8x1xf32> to vector<8x32xf32>
    %138 = arith.subf %128, %137 : vector<8x32xf32>
    %139 = arith.mulf %138, %138 : vector<8x32xf32>
    %cst_98 = arith.constant dense<0.000000e+00> : vector<8xf32>
    %140 = vector.multi_reduction <add>, %139, %cst_98 [1] : vector<8x32xf32> to vector<8xf32>
    %141 = vector.shape_cast %140 : vector<8xf32> to vector<8x1xf32>
    %cst_99 = arith.constant 3.200000e+01 : f32
    %142 = vector.broadcast %cst_99 : f32 to vector<8x1xf32>
    %143 = arith.divf %141, %142 : vector<8x1xf32>
    %144 = vector.broadcast %136 : vector<8x1xf32> to vector<8x32xf32>
    %145 = arith.subf %128, %144 : vector<8x32xf32>
    %cst_100 = arith.constant 9.99999974E-6 : f32
    %146 = vector.broadcast %cst_100 : f32 to vector<8x1xf32>
    %147 = arith.addf %143, %146 : vector<8x1xf32>
    %148 = math.rsqrt %147 : vector<8x1xf32>
    %149 = vector.broadcast %148 : vector<8x1xf32> to vector<8x32xf32>
    %150 = arith.mulf %145, %149 : vector<8x32xf32>
    %151 = vector.broadcast %130 : vector<1x32xf32> to vector<8x32xf32>
    %152 = arith.mulf %150, %151 : vector<8x32xf32>
    %153 = vector.broadcast %132 : vector<1x32xf32> to vector<8x32xf32>
    %154 = arith.addf %152, %153 : vector<8x32xf32>
    %155 = arith.truncf %154 : vector<8x32xf32> to vector<8x32xbf16>
    %c0_101 = arith.constant 0 : index
    %c0_102 = arith.constant 0 : index
    %c0_103 = arith.constant 0 : index
    %156 = vector.load %arg15[%c0_101, %c0_102, %c0_103] : memref<1x32x128xbf16, #tpu.memory_space<vmem>>, vector<1x32x128xbf16>
    %157 = vector.shape_cast %156 : vector<1x32x128xbf16> to vector<32x128xbf16>
    %cst_104 = arith.constant dense<0.000000e+00> : vector<8x128xf32>
    %158 = tpu.matmul %155, %157, %cst_104 {dimension_numbers = #tpu.dot_dimension_numbers<[1], [0], [0], [1], [0, 0, 1, 1], [], []>} : vector<8x32xbf16>, vector<32x128xbf16>, vector<8x128xf32> -> vector<8x128xf32>
    %c0_105 = arith.constant 0 : index
    %c0_106 = arith.constant 0 : index
    %c0_107 = arith.constant 0 : index
    %159 = vector.load %arg16[%c0_105, %c0_106, %c0_107] : memref<1x1x128xf32, #tpu.memory_space<vmem>>, vector<1x1x128xf32>
    %160 = vector.shape_cast %159 : vector<1x1x128xf32> to vector<1x128xf32>
    %161 = vector.broadcast %160 : vector<1x128xf32> to vector<8x128xf32>
    %162 = arith.addf %158, %161 : vector<8x128xf32>
    %cst_108 = arith.constant 5.000000e-01 : f32
    %163 = vector.broadcast %cst_108 : f32 to vector<8x128xf32>
    %164 = arith.mulf %163, %162 : vector<8x128xf32>
    %cst_109 = arith.constant 4.471500e-02 : f32
    %165 = vector.broadcast %cst_109 : f32 to vector<8x128xf32>
    %166 = arith.mulf %165, %162 : vector<8x128xf32>
    %167 = arith.mulf %166, %162 : vector<8x128xf32>
    %168 = arith.mulf %167, %162 : vector<8x128xf32>
    %169 = arith.addf %162, %168 : vector<8x128xf32>
    %cst_110 = arith.constant 0.797884583 : f32
    %170 = vector.broadcast %cst_110 : f32 to vector<8x128xf32>
    %171 = arith.mulf %170, %169 : vector<8x128xf32>
    %172 = math.tanh %171 : vector<8x128xf32>
    %cst_111 = arith.constant 1.000000e+00 : f32
    %173 = vector.broadcast %cst_111 : f32 to vector<8x128xf32>
    %174 = arith.addf %173, %172 : vector<8x128xf32>
    %175 = arith.mulf %164, %174 : vector<8x128xf32>
    %176 = arith.truncf %175 : vector<8x128xf32> to vector<8x128xbf16>
    %c0_112 = arith.constant 0 : index
    %c0_113 = arith.constant 0 : index
    %c0_114 = arith.constant 0 : index
    %177 = vector.load %arg17[%c0_112, %c0_113, %c0_114] : memref<1x128x32xbf16, #tpu.memory_space<vmem>>, vector<1x128x32xbf16>
    %178 = vector.shape_cast %177 : vector<1x128x32xbf16> to vector<128x32xbf16>
    %cst_115 = arith.constant dense<0.000000e+00> : vector<8x32xf32>
    %179 = tpu.matmul %176, %178, %cst_115 {dimension_numbers = #tpu.dot_dimension_numbers<[1], [0], [0], [1], [0, 0, 1, 1], [], []>} : vector<8x128xbf16>, vector<128x32xbf16>, vector<8x32xf32> -> vector<8x32xf32>
    %c0_116 = arith.constant 0 : index
    %c0_117 = arith.constant 0 : index
    %c0_118 = arith.constant 0 : index
    %180 = vector.load %arg18[%c0_116, %c0_117, %c0_118] : memref<1x1x32xf32, #tpu.memory_space<vmem>>, vector<1x1x32xf32>
    %181 = vector.shape_cast %180 : vector<1x1x32xf32> to vector<1x32xf32>
    %182 = vector.broadcast %181 : vector<1x32xf32> to vector<8x32xf32>
    %183 = arith.addf %179, %182 : vector<8x32xf32>
    %184 = arith.addf %128, %183 : vector<8x32xf32>
    %c0_119 = arith.constant 0 : index
    %c0_120 = arith.constant 0 : index
    %c0_121 = arith.constant 0 : index
    %185 = vector.load %arg19[%c0_119, %c0_120, %c0_121] : memref<1x8x32xf32, #tpu.memory_space<vmem>>, vector<1x8x32xf32>
    %186 = vector.shape_cast %185 : vector<1x8x32xf32> to vector<8x32xf32>
    %187 = vector.shape_cast %184 : vector<8x32xf32> to vector<1x8x32xf32>
    tpu.vector_store %arg19[%c0_119, %c0_120, %c0_121], %187 {strides = array<i32>} : memref<1x8x32xf32, #tpu.memory_space<vmem>>, vector<1x8x32xf32>,
    return
  }
  func.func @transform_0(%arg0: i32, %arg1: i32) -> (i32, i32, i32) {
    %c0_i32 = arith.constant 0 : i32
    %c0_i32_0 = arith.constant 0 : i32
    %c0_i32_1 = arith.constant 0 : i32
    return %arg0, %c0_i32, %c0_i32_0 : i32, i32, i32
  }
  func.func @transform_1(%arg0: i32, %arg1: i32) -> (i32, i32, i32) {
    %c0_i32 = arith.constant 0 : i32
    %c0_i32_0 = arith.constant 0 : i32
    %c0_i32_1 = arith.constant 0 : i32
    return %arg1, %c0_i32, %c0_i32_0 : i32, i32, i32
  }
  func.func @transform_2(%arg0: i32, %arg1: i32) -> (i32, i32, i32) {
    %c0_i32 = arith.constant 0 : i32
    %c0_i32_0 = arith.constant 0 : i32
    %c0_i32_1 = arith.constant 0 : i32
    return %arg1, %c0_i32, %c0_i32_0 : i32, i32, i32
  }
  func.func @transform_3(%arg0: i32, %arg1: i32) -> (i32, i32, i32, i32) {
    %c0_i32 = arith.constant 0 : i32
    %c0_i32_0 = arith.constant 0 : i32
    %c0_i32_1 = arith.constant 0 : i32
    %c0_i32_2 = arith.constant 0 : i32
    return %arg1, %c0_i32, %c0_i32_0, %c0_i32_1 : i32, i32, i32, i32
  }
  func.func @transform_4(%arg0: i32, %arg1: i32) -> (i32, i32, i32, i32) {
    %c0_i32 = arith.constant 0 : i32
    %c0_i32_0 = arith.constant 0 : i32
    %c0_i32_1 = arith.constant 0 : i32
    %c0_i32_2 = arith.constant 0 : i32
    return %arg1, %c0_i32, %c0_i32_0, %c0_i32_1 : i32, i32, i32, i32
  }
  func.func @transform_5(%arg0: i32, %arg1: i32) -> (i32, i32, i32, i32) {
    %c0_i32 = arith.constant 0 : i32
    %c0_i32_0 = arith.constant 0 : i32
    %c0_i32_1 = arith.constant 0 : i32
    %c0_i32_2 = arith.constant 0 : i32
    return %arg1, %c0_i32, %c0_i32_0, %c0_i32_1 : i32, i32, i32, i32
  }
  func.func @transform_6(%arg0: i32, %arg1: i32) -> (i32, i32, i32, i32) {
    %c0_i32 = arith.constant 0 : i32
    %c0_i32_0 = arith.constant 0 : i32
    %c0_i32_1 = arith.constant 0 : i32
    %c0_i32_2 = arith.constant 0 : i32
    return %arg1, %c0_i32, %c0_i32_0, %c0_i32_1 : i32, i32, i32, i32
  }
  func.func @transform_7(%arg0: i32, %arg1: i32) -> (i32, i32, i32, i32) {
    %c0_i32 = arith.constant 0 : i32
    %c0_i32_0 = arith.constant 0 : i32
    %c0_i32_1 = arith.constant 0 : i32
    %c0_i32_2 = arith.constant 0 : i32
    return %arg1, %c0_i32, %c0_i32_0, %c0_i32_1 : i32, i32, i32, i32
  }
  func.func @transform_8(%arg0: i32, %arg1: i32) -> (i32, i32, i32, i32) {
    %c0_i32 = arith.constant 0 : i32
    %c0_i32_0 = arith.constant 0 : i32
    %c0_i32_1 = arith.constant 0 : i32
    %c0_i32_2 = arith.constant 0 : i32
    return %arg1, %c0_i32, %c0_i32_0, %c0_i32_1 : i32, i32, i32, i32
  }
  func.func @transform_9(%arg0: i32, %arg1: i32) -> (i32, i32, i32, i32) {
    %c0_i32 = arith.constant 0 : i32
    %c0_i32_0 = arith.constant 0 : i32
    %c0_i32_1 = arith.constant 0 : i32
    %c0_i32_2 = arith.constant 0 : i32
    return %arg1, %c0_i32, %c0_i32_0, %c0_i32_1 : i32, i32, i32, i32
  }
  func.func @transform_10(%arg0: i32, %arg1: i32) -> (i32, i32, i32) {
    %c0_i32 = arith.constant 0 : i32
    %c0_i32_0 = arith.constant 0 : i32
    %c0_i32_1 = arith.constant 0 : i32
    return %arg1, %c0_i32, %c0_i32_0 : i32, i32, i32
  }
  func.func @transform_11(%arg0: i32, %arg1: i32) -> (i32, i32, i32) {
    %c0_i32 = arith.constant 0 : i32
    %c0_i32_0 = arith.constant 0 : i32
    %c0_i32_1 = arith.constant 0 : i32
    return %arg1, %c0_i32, %c0_i32_0 : i32, i32, i32
  }
  func.func @transform_12(%arg0: i32, %arg1: i32) -> (i32, i32, i32) {
    %c0_i32 = arith.constant 0 : i32
    %c0_i32_0 = arith.constant 0 : i32
    %c0_i32_1 = arith.constant 0 : i32
    return %arg1, %c0_i32, %c0_i32_0 : i32, i32, i32
  }
  func.func @transform_13(%arg0: i32, %arg1: i32) -> (i32, i32, i32) {
    %c0_i32 = arith.constant 0 : i32
    %c0_i32_0 = arith.constant 0 : i32
    %c0_i32_1 = arith.constant 0 : i32
    return %arg1, %c0_i32, %c0_i32_0 : i32, i32, i32
  }
  func.func @transform_14(%arg0: i32, %arg1: i32) -> (i32, i32, i32) {
    %c0_i32 = arith.constant 0 : i32
    %c0_i32_0 = arith.constant 0 : i32
    %c0_i32_1 = arith.constant 0 : i32
    return %arg1, %c0_i32, %c0_i32_0 : i32, i32, i32
  }
  func.func @transform_15(%arg0: i32, %arg1: i32) -> (i32, i32, i32) {
    %c0_i32 = arith.constant 0 : i32
    %c0_i32_0 = arith.constant 0 : i32
    %c0_i32_1 = arith.constant 0 : i32
    return %arg1, %c0_i32, %c0_i32_0 : i32, i32, i32
  }
  func.func @transform_16(%arg0: i32, %arg1: i32) -> (i32, i32, i32) {
    %c0_i32 = arith.constant 0 : i32
    %c0_i32_0 = arith.constant 0 : i32
    %c0_i32_1 = arith.constant 0 : i32
    return %arg1, %c0_i32, %c0_i32_0 : i32, i32, i32
  }
  func.func @transform_17(%arg0: i32, %arg1: i32) -> (i32, i32, i32) {
    %c0_i32 = arith.constant 0 : i32
    %c0_i32_0 = arith.constant 0 : i32
    %c0_i32_1 = arith.constant 0 : i32
    return %arg0, %c0_i32, %c0_i32_0 : i32, i32, i32
  }
}

</mosaic_0001>

<llo_original>
// kernel: tpu_custom_call.1
$region0: #{tpu_custom_call.1}
  #allocation0 [shape = 'u32[]', space=smem, size = 0x4, offset = 0x4, fixed_abs, tag = 'smem constant byte address 0x4 - core index']
  #allocation1 [shape = 'u32[72,128]{1,0:T(1,128)}', space=vmem, size = 0x9000, scoped, tag = 'internal scratch']
  %s0 = inlined_call_operand.vmem [shape: f32[2,8,32], index: 0, kind: input, shape index: {}]
  %s1 = inlined_call_operand.vmem [shape: f32[2,1,32], index: 1, kind: input, shape index: {}]
  %s2 = inlined_call_operand.vmem [shape: f32[2,1,32], index: 2, kind: input, shape index: {}]
  %s3 = inlined_call_operand.vmem [shape: bf16[2,2,32,16], index: 3, kind: input, shape index: {}]
  %s4 = inlined_call_operand.vmem [shape: f32[2,2,1,16], index: 4, kind: input, shape index: {}]
  %s5 = inlined_call_operand.vmem [shape: bf16[2,2,32,16], index: 5, kind: input, shape index: {}]
  %s6 = inlined_call_operand.vmem [shape: f32[2,2,1,16], index: 6, kind: input, shape index: {}]
  %s7 = inlined_call_operand.vmem [shape: bf16[2,2,32,16], index: 7, kind: input, shape index: {}]
  %s8 = inlined_call_operand.vmem [shape: f32[2,2,1,16], index: 8, kind: input, shape index: {}]
  %s9 = inlined_call_operand.vmem [shape: bf16[2,2,16,32], index: 9, kind: input, shape index: {}]
  %s10 = inlined_call_operand.vmem [shape: f32[2,1,32], index: 10, kind: input, shape index: {}]
  %s11 = inlined_call_operand.vmem [shape: f32[2,1,32], index: 11, kind: input, shape index: {}]
  %s12 = inlined_call_operand.vmem [shape: f32[2,1,32], index: 12, kind: input, shape index: {}]
  %s13 = inlined_call_operand.vmem [shape: bf16[2,32,128], index: 13, kind: input, shape index: {}]
  %s14 = inlined_call_operand.vmem [shape: f32[2,1,128], index: 14, kind: input, shape index: {}]
  %s15 = inlined_call_operand.vmem [shape: bf16[2,128,32], index: 15, kind: input, shape index: {}]
  %s16 = inlined_call_operand.vmem [shape: f32[2,1,32], index: 16, kind: input, shape index: {}]
  %s17 = inlined_call_operand.hbm [shape: f32[2,8,32], index: 17, kind: output, shape index: {}]
  %s18 = sld [smem:[#allocation0]]
  $region105: #{tpu_custom_call.1} parent=0
    _
  %s20 = ssub.s32 1, %s18
  %s21 = scalar_select 0, %s20, %s18
  $region1: #{tpu_custom_call.1} parent=0
    #allocation2 [shape = 'u8[8192]{0}', space=vmem, size = 0x2000, scoped, tag = 'output window, operand 0']
    #allocation3 [shape = 's32[2]{0}', space=sflag, size = 0x8, scoped, tag = 'scoped memory for tpu_custom_call.1']
    %22 = vsyncpa [#allocation3], 0
    %s23 = scalar_lea.sflag [#allocation3], 1
    %24 = vsyncpa %s23, 0
    loop: start=0, step=1, limit=6
    $region2: #{tpu_custom_call.1} parent=1 // loop_pre_header
      _
    $region3: #{tpu_custom_call.1} parent=1 // loop_header
      %s26 = sphi 0, %s30
      %p27 = scmp.ge.s32.totalorder %s26, 6
      %s33 = sphi 0, %s45
      %s34 = sphi 0, %s41
      %s35 = sphi 0, %s33
      %s36 = sphi 0, %s34
      %s37 = sphi 0, %s35
      %s38 = sphi 0, %s36
      %s48 = sphi 0, %s50
      %s51 = sphi 0, %s48
      %s52 = sphi 0, %s51
      %s68 = sphi 0, %s52
      %s74 = sphi 0, %s76
      %s77 = sphi 0, %s74
      %s78 = sphi 0, %s77
      %s94 = sphi 0, %s78
      %s100 = sphi 0, %s102
      %s103 = sphi 0, %s100
      %s104 = sphi 0, %s103
      %s120 = sphi 0, %s104
      %s126 = sphi 0, %s128
      %s129 = sphi 0, %s126
      %s130 = sphi 0, %s129
      %s146 = sphi 0, %s130
      %s152 = sphi 0, %s154
      %s155 = sphi 0, %s152
      %s156 = sphi 0, %s155
      %s172 = sphi 0, %s156
      %s178 = sphi 0, %s180
      %s181 = sphi 0, %s178
      %s182 = sphi 0, %s181
      %s198 = sphi 0, %s182
      %s204 = sphi 0, %s206
      %s207 = sphi 0, %s204
      %s208 = sphi 0, %s207
      %s224 = sphi 0, %s208
      %s230 = sphi 0, %s232
      %s233 = sphi 0, %s230
      %s234 = sphi 0, %s233
      %s250 = sphi 0, %s234
      %s256 = sphi 0, %s258
      %s259 = sphi 0, %s256
      %s260 = sphi 0, %s259
      %s276 = sphi 0, %s260
      %s282 = sphi 0, %s284
      %s285 = sphi 0, %s282
      %s286 = sphi 0, %s285
      %s302 = sphi 0, %s286
      %s308 = sphi 0, %s310
      %s311 = sphi 0, %s308
      %s312 = sphi 0, %s311
      %s328 = sphi 0, %s312
      %s334 = sphi 0, %s336
      %s337 = sphi 0, %s334
      %s338 = sphi 0, %s337
      %s354 = sphi 0, %s338
      %s360 = sphi 0, %s362
      %s363 = sphi 0, %s360
      %s364 = sphi 0, %s363
      %s380 = sphi 0, %s364
      %s386 = sphi 0, %s388
      %s389 = sphi 0, %s386
      %s390 = sphi 0, %s389
      %s406 = sphi 0, %s390
      %s412 = sphi 0, %s414
      %s415 = sphi 0, %s412
      %s416 = sphi 0, %s415
      %s432 = sphi 0, %s416
      %s438 = sphi 0, %s440
      %s441 = sphi 0, %s438
      %s442 = sphi 0, %s441
      %s458 = sphi 0, %s442
      %s464 = sphi 0, %s466
      %s467 = sphi 0, %s464
      %s468 = sphi 0, %s467
      %s484 = sphi 0, %s468
      %s490 = sphi 0, %s492
      %s493 = sphi 0, %s490
      %s494 = sphi 0, %s493
      %s510 = sphi 0, %s494
    $region4: #{tpu_custom_call.1} parent=1 // loop_header_branch
      %29 = sbr.rel (%p27) target = $region8
    $region5: #{tpu_custom_call.1} parent=1 // loop_body
      %s31 = ssub.s32 %s26, 1
      %s32 = ssub.s32 %s26, 2
      %s39 = sadd.s32 1, %s34
      %p40 = scmp.ge.s32.totalorder %s39, 2
      %s41 = scalar_select %p40, 0, %s39
      %s42 = sadd.s32 1, %s33
      %s43 = scalar_select %p40, %s42, %s33
      %p44 = scmp.ge.s32.totalorder %s43, 2
      %s45 = scalar_select %p44, 0, %s43
      %s46 = ssub.s32 %s33, %s45
      %p47 = scmp.eq.s32.totalorder %s46, 0
      %s49 = sadd.s32 %s48, 1
      %s50 = scalar_select %p47, %s48, %s49
      %p53 = pneg %p47
      %p54 = scmp.eq.s32.totalorder %s26, 3
      %p55 = por %p53, %p54
      %p56 = scmp.ne.s32.totalorder %s48, %s51
      %p57 = scmp.eq.s32.totalorder %s26, 0
      %p58 = por %p56, %p57
      %p59 = scmp.ne.s32.totalorder %s48, %s51
      %p60 = scmp.eq.s32.totalorder %s31, 3
      %p61 = por %p59, %p60
      %p62 = scmp.ne.s32.totalorder %s51, %s52
      %p63 = scmp.eq.s32.totalorder %s31, 0
      %p64 = por %p62, %p63
      %p65 = scmp.ne.s32.totalorder %s51, %s52
      %p66 = scmp.eq.s32.totalorder %s32, 3
      %p67 = por %p65, %p66
      %p69 = scmp.ne.s32.totalorder %s52, %s68
      %p70 = scmp.eq.s32.totalorder %s32, 0
      %p71 = por %p69, %p70
      %s72 = ssub.s32 %s34, %s41
      %p73 = scmp.eq.s32.totalorder %s72, 0
      %s75 = sadd.s32 %s74, 1
      %s76 = scalar_select %p73, %s74, %s75
      %p79 = pneg %p73
      %p80 = scmp.eq.s32.totalorder %s26, 3
      %p81 = por %p79, %p80
      %p82 = scmp.ne.s32.totalorder %s74, %s77
      %p83 = scmp.eq.s32.totalorder %s26, 0
      %p84 = por %p82, %p83
      %p85 = scmp.ne.s32.totalorder %s74, %s77
      %p86 = scmp.eq.s32.totalorder %s31, 3
      %p87 = por %p85, %p86
      %p88 = scmp.ne.s32.totalorder %s77, %s78
      %p89 = scmp.eq.s32.totalorder %s31, 0
      %p90 = por %p88, %p89
      %p91 = scmp.ne.s32.totalorder %s77, %s78
      %p92 = scmp.eq.s32.totalorder %s32, 3
      %p93 = por %p91, %p92
      %p95 = scmp.ne.s32.totalorder %s78, %s94
      %p96 = scmp.eq.s32.totalorder %s32, 0
      %p97 = por %p95, %p96
      %s98 = ssub.s32 %s34, %s41
      %p99 = scmp.eq.s32.totalorder %s98, 0
      %s101 = sadd.s32 %s100, 1
      %s102 = scalar_select %p99, %s100, %s101
      %p105 = pneg %p99
      %p106 = scmp.eq.s32.totalorder %s26, 3
      %p107 = por %p105, %p106
      %p108 = scmp.ne.s32.totalorder %s100, %s103
      %p109 = scmp.eq.s32.totalorder %s26, 0
      %p110 = por %p108, %p109
      %p111 = scmp.ne.s32.totalorder %s100, %s103
      %p112 = scmp.eq.s32.totalorder %s31, 3
      %p113 = por %p111, %p112
      %p114 = scmp.ne.s32.totalorder %s103, %s104
      %p115 = scmp.eq.s32.totalorder %s31, 0
      %p116 = por %p114, %p115
      %p117 = scmp.ne.s32.totalorder %s103, %s104
      %p118 = scmp.eq.s32.totalorder %s32, 3
      %p119 = por %p117, %p118
      %p121 = scmp.ne.s32.totalorder %s104, %s120
      %p122 = scmp.eq.s32.totalorder %s32, 0
      %p123 = por %p121, %p122
      %s124 = ssub.s32 %s34, %s41
      %p125 = scmp.eq.s32.totalorder %s124, 0
      %s127 = sadd.s32 %s126, 1
      %s128 = scalar_select %p125, %s126, %s127
      %p131 = pneg %p125
      %p132 = scmp.eq.s32.totalorder %s26, 3
      %p133 = por %p131, %p132
      %p134 = scmp.ne.s32.totalorder %s126, %s129
      %p135 = scmp.eq.s32.totalorder %s26, 0
      %p136 = por %p134, %p135
      %p137 = scmp.ne.s32.totalorder %s126, %s129
      %p138 = scmp.eq.s32.totalorder %s31, 3
      %p139 = por %p137, %p138
      %p140 = scmp.ne.s32.totalorder %s129, %s130
      %p141 = scmp.eq.s32.totalorder %s31, 0
      %p142 = por %p140, %p141
      %p143 = scmp.ne.s32.totalorder %s129, %s130
      %p144 = scmp.eq.s32.totalorder %s32, 3
      %p145 = por %p143, %p144
      %p147 = scmp.ne.s32.totalorder %s130, %s146
      %p148 = scmp.eq.s32.totalorder %s32, 0
      %p149 = por %p147, %p148
      %s150 = ssub.s32 %s34, %s41
      %p151 = scmp.eq.s32.totalorder %s150, 0
      %s153 = sadd.s32 %s152, 1
      %s154 = scalar_select %p151, %s152, %s153
      %p157 = pneg %p151
      %p158 = scmp.eq.s32.totalorder %s26, 3
      %p159 = por %p157, %p158
      %p160 = scmp.ne.s32.totalorder %s152, %s155
      %p161 = scmp.eq.s32.totalorder %s26, 0
      %p162 = por %p160, %p161
      %p163 = scmp.ne.s32.totalorder %s152, %s155
      %p164 = scmp.eq.s32.totalorder %s31, 3
      %p165 = por %p163, %p164
      %p166 = scmp.ne.s32.totalorder %s155, %s156
      %p167 = scmp.eq.s32.totalorder %s31, 0
      %p168 = por %p166, %p167
      %p169 = scmp.ne.s32.totalorder %s155, %s156
      %p170 = scmp.eq.s32.totalorder %s32, 3
      %p171 = por %p169, %p170
      %p173 = scmp.ne.s32.totalorder %s156, %s172
      %p174 = scmp.eq.s32.totalorder %s32, 0
      %p175 = por %p173, %p174
      %s176 = ssub.s32 %s34, %s41
      %p177 = scmp.eq.s32.totalorder %s176, 0
      %s179 = sadd.s32 %s178, 1
      %s180 = scalar_select %p177, %s178, %s179
      %p183 = pneg %p177
      %p184 = scmp.eq.s32.totalorder %s26, 3
      %p185 = por %p183, %p184
      %p186 = scmp.ne.s32.totalorder %s178, %s181
      %p187 = scmp.eq.s32.totalorder %s26, 0
      %p188 = por %p186, %p187
      %p189 = scmp.ne.s32.totalorder %s178, %s181
      %p190 = scmp.eq.s32.totalorder %s31, 3
      %p191 = por %p189, %p190
      %p192 = scmp.ne.s32.totalorder %s181, %s182
      %p193 = scmp.eq.s32.totalorder %s31, 0
      %p194 = por %p192, %p193
      %p195 = scmp.ne.s32.totalorder %s181, %s182
      %p196 = scmp.eq.s32.totalorder %s32, 3
      %p197 = por %p195, %p196
      %p199 = scmp.ne.s32.totalorder %s182, %s198
      %p200 = scmp.eq.s32.totalorder %s32, 0
      %p201 = por %p199, %p200
      %s202 = ssub.s32 %s34, %s41
      %p203 = scmp.eq.s32.totalorder %s202, 0
      %s205 = sadd.s32 %s204, 1
      %s206 = scalar_select %p203, %s204, %s205
      %p209 = pneg %p203
      %p210 = scmp.eq.s32.totalorder %s26, 3
      %p211 = por %p209, %p210
      %p212 = scmp.ne.s32.totalorder %s204, %s207
      %p213 = scmp.eq.s32.totalorder %s26, 0
      %p214 = por %p212, %p213
      %p215 = scmp.ne.s32.totalorder %s204, %s207
      %p216 = scmp.eq.s32.totalorder %s31, 3
      %p217 = por %p215, %p216
      %p218 = scmp.ne.s32.totalorder %s207, %s208
      %p219 = scmp.eq.s32.totalorder %s31, 0
      %p220 = por %p218, %p219
      %p221 = scmp.ne.s32.totalorder %s207, %s208
      %p222 = scmp.eq.s32.totalorder %s32, 3
      %p223 = por %p221, %p222
      %p225 = scmp.ne.s32.totalorder %s208, %s224
      %p226 = scmp.eq.s32.totalorder %s32, 0
      %p227 = por %p225, %p226
      %s228 = ssub.s32 %s34, %s41
      %p229 = scmp.eq.s32.totalorder %s228, 0
      %s231 = sadd.s32 %s230, 1
      %s232 = scalar_select %p229, %s230, %s231
      %p235 = pneg %p229
      %p236 = scmp.eq.s32.totalorder %s26, 3
      %p237 = por %p235, %p236
      %p238 = scmp.ne.s32.totalorder %s230, %s233
      %p239 = scmp.eq.s32.totalorder %s26, 0
      %p240 = por %p238, %p239
      %p241 = scmp.ne.s32.totalorder %s230, %s233
      %p242 = scmp.eq.s32.totalorder %s31, 3
      %p243 = por %p241, %p242
      %p244 = scmp.ne.s32.totalorder %s233, %s234
      %p245 = scmp.eq.s32.totalorder %s31, 0
      %p246 = por %p244, %p245
      %p247 = scmp.ne.s32.totalorder %s233, %s234
      %p248 = scmp.eq.s32.totalorder %s32, 3
      %p249 = por %p247, %p248
      %p251 = scmp.ne.s32.totalorder %s234, %s250
      %p252 = scmp.eq.s32.totalorder %s32, 0
      %p253 = por %p251, %p252
      %s254 = ssub.s32 %s34, %s41
      %p255 = scmp.eq.s32.totalorder %s254, 0
      %s257 = sadd.s32 %s256, 1
      %s258 = scalar_select %p255, %s256, %s257
      %p261 = pneg %p255
      %p262 = scmp.eq.s32.totalorder %s26, 3
      %p263 = por %p261, %p262
      %p264 = scmp.ne.s32.totalorder %s256, %s259
      %p265 = scmp.eq.s32.totalorder %s26, 0
      %p266 = por %p264, %p265
      %p267 = scmp.ne.s32.totalorder %s256, %s259
      %p268 = scmp.eq.s32.totalorder %s31, 3
      %p269 = por %p267, %p268
      %p270 = scmp.ne.s32.totalorder %s259, %s260
      %p271 = scmp.eq.s32.totalorder %s31, 0
      %p272 = por %p270, %p271
      %p273 = scmp.ne.s32.totalorder %s259, %s260
      %p274 = scmp.eq.s32.totalorder %s32, 3
      %p275 = por %p273, %p274
      %p277 = scmp.ne.s32.totalorder %s260, %s276
      %p278 = scmp.eq.s32.totalorder %s32, 0
      %p279 = por %p277, %p278
      %s280 = ssub.s32 %s34, %s41
      %p281 = scmp.eq.s32.totalorder %s280, 0
      %s283 = sadd.s32 %s282, 1
      %s284 = scalar_select %p281, %s282, %s283
      %p287 = pneg %p281
      %p288 = scmp.eq.s32.totalorder %s26, 3
      %p289 = por %p287, %p288
      %p290 = scmp.ne.s32.totalorder %s282, %s285
      %p291 = scmp.eq.s32.totalorder %s26, 0
      %p292 = por %p290, %p291
      %p293 = scmp.ne.s32.totalorder %s282, %s285
      %p294 = scmp.eq.s32.totalorder %s31, 3
      %p295 = por %p293, %p294
      %p296 = scmp.ne.s32.totalorder %s285, %s286
      %p297 = scmp.eq.s32.totalorder %s31, 0
      %p298 = por %p296, %p297
      %p299 = scmp.ne.s32.totalorder %s285, %s286
      %p300 = scmp.eq.s32.totalorder %s32, 3
      %p301 = por %p299, %p300
      %p303 = scmp.ne.s32.totalorder %s286, %s302
      %p304 = scmp.eq.s32.totalorder %s32, 0
      %p305 = por %p303, %p304
      %s306 = ssub.s32 %s34, %s41
      %p307 = scmp.eq.s32.totalorder %s306, 0
      %s309 = sadd.s32 %s308, 1
      %s310 = scalar_select %p307, %s308, %s309
      %p313 = pneg %p307
      %p314 = scmp.eq.s32.totalorder %s26, 3
      %p315 = por %p313, %p314
      %p316 = scmp.ne.s32.totalorder %s308, %s311
      %p317 = scmp.eq.s32.totalorder %s26, 0
      %p318 = por %p316, %p317
      %p319 = scmp.ne.s32.totalorder %s308, %s311
      %p320 = scmp.eq.s32.totalorder %s31, 3
      %p321 = por %p319, %p320
      %p322 = scmp.ne.s32.totalorder %s311, %s312
      %p323 = scmp.eq.s32.totalorder %s31, 0
      %p324 = por %p322, %p323
      %p325 = scmp.ne.s32.totalorder %s311, %s312
      %p326 = scmp.eq.s32.totalorder %s32, 3
      %p327 = por %p325, %p326
      %p329 = scmp.ne.s32.totalorder %s312, %s328
      %p330 = scmp.eq.s32.totalorder %s32, 0
      %p331 = por %p329, %p330
      %s332 = ssub.s32 %s34, %s41
      %p333 = scmp.eq.s32.totalorder %s332, 0
      %s335 = sadd.s32 %s334, 1
      %s336 = scalar_select %p333, %s334, %s335
      %p339 = pneg %p333
      %p340 = scmp.eq.s32.totalorder %s26, 3
      %p341 = por %p339, %p340
      %p342 = scmp.ne.s32.totalorder %s334, %s337
      %p343 = scmp.eq.s32.totalorder %s26, 0
      %p344 = por %p342, %p343
      %p345 = scmp.ne.s32.totalorder %s334, %s337
      %p346 = scmp.eq.s32.totalorder %s31, 3
      %p347 = por %p345, %p346
      %p348 = scmp.ne.s32.totalorder %s337, %s338
      %p349 = scmp.eq.s32.totalorder %s31, 0
      %p350 = por %p348, %p349
      %p351 = scmp.ne.s32.totalorder %s337, %s338
      %p352 = scmp.eq.s32.totalorder %s32, 3
      %p353 = por %p351, %p352
      %p355 = scmp.ne.s32.totalorder %s338, %s354
      %p356 = scmp.eq.s32.totalorder %s32, 0
      %p357 = por %p355, %p356
      %s358 = ssub.s32 %s34, %s41
      %p359 = scmp.eq.s32.totalorder %s358, 0
      %s361 = sadd.s32 %s360, 1
      %s362 = scalar_select %p359, %s360, %s361
      %p365 = pneg %p359
      %p366 = scmp.eq.s32.totalorder %s26, 3
      %p367 = por %p365, %p366
      %p368 = scmp.ne.s32.totalorder %s360, %s363
      %p369 = scmp.eq.s32.totalorder %s26, 0
      %p370 = por %p368, %p369
      %p371 = scmp.ne.s32.totalorder %s360, %s363
      %p372 = scmp.eq.s32.totalorder %s31, 3
      %p373 = por %p371, %p372
      %p374 = scmp.ne.s32.totalorder %s363, %s364
      %p375 = scmp.eq.s32.totalorder %s31, 0
      %p376 = por %p374, %p375
      %p377 = scmp.ne.s32.totalorder %s363, %s364
      %p378 = scmp.eq.s32.totalorder %s32, 3
      %p379 = por %p377, %p378
      %p381 = scmp.ne.s32.totalorder %s364, %s380
      %p382 = scmp.eq.s32.totalorder %s32, 0
      %p383 = por %p381, %p382
      %s384 = ssub.s32 %s34, %s41
      %p385 = scmp.eq.s32.totalorder %s384, 0
      %s387 = sadd.s32 %s386, 1
      %s388 = scalar_select %p385, %s386, %s387
      %p391 = pneg %p385
      %p392 = scmp.eq.s32.totalorder %s26, 3
      %p393 = por %p391, %p392
      %p394 = scmp.ne.s32.totalorder %s386, %s389
      %p395 = scmp.eq.s32.totalorder %s26, 0
      %p396 = por %p394, %p395
      %p397 = scmp.ne.s32.totalorder %s386, %s389
      %p398 = scmp.eq.s32.totalorder %s31, 3
      %p399 = por %p397, %p398
      %p400 = scmp.ne.s32.totalorder %s389, %s390
      %p401 = scmp.eq.s32.totalorder %s31, 0
      %p402 = por %p400, %p401
      %p403 = scmp.ne.s32.totalorder %s389, %s390
      %p404 = scmp.eq.s32.totalorder %s32, 3
      %p405 = por %p403, %p404
      %p407 = scmp.ne.s32.totalorder %s390, %s406
      %p408 = scmp.eq.s32.totalorder %s32, 0
      %p409 = por %p407, %p408
      %s410 = ssub.s32 %s34, %s41
      %p411 = scmp.eq.s32.totalorder %s410, 0
      %s413 = sadd.s32 %s412, 1
      %s414 = scalar_select %p411, %s412, %s413
      %p417 = pneg %p411
      %p418 = scmp.eq.s32.totalorder %s26, 3
      %p419 = por %p417, %p418
      %p420 = scmp.ne.s32.totalorder %s412, %s415
      %p421 = scmp.eq.s32.totalorder %s26, 0
      %p422 = por %p420, %p421
      %p423 = scmp.ne.s32.totalorder %s412, %s415
      %p424 = scmp.eq.s32.totalorder %s31, 3
      %p425 = por %p423, %p424
      %p426 = scmp.ne.s32.totalorder %s415, %s416
      %p427 = scmp.eq.s32.totalorder %s31, 0
      %p428 = por %p426, %p427
      %p429 = scmp.ne.s32.totalorder %s415, %s416
      %p430 = scmp.eq.s32.totalorder %s32, 3
      %p431 = por %p429, %p430
      %p433 = scmp.ne.s32.totalorder %s416, %s432
      %p434 = scmp.eq.s32.totalorder %s32, 0
      %p435 = por %p433, %p434
      %s436 = ssub.s32 %s34, %s41
      %p437 = scmp.eq.s32.totalorder %s436, 0
      %s439 = sadd.s32 %s438, 1
      %s440 = scalar_select %p437, %s438, %s439
      %p443 = pneg %p437
      %p444 = scmp.eq.s32.totalorder %s26, 3
      %p445 = por %p443, %p444
      %p446 = scmp.ne.s32.totalorder %s438, %s441
      %p447 = scmp.eq.s32.totalorder %s26, 0
      %p448 = por %p446, %p447
      %p449 = scmp.ne.s32.totalorder %s438, %s441
      %p450 = scmp.eq.s32.totalorder %s31, 3
      %p451 = por %p449, %p450
      %p452 = scmp.ne.s32.totalorder %s441, %s442
      %p453 = scmp.eq.s32.totalorder %s31, 0
      %p454 = por %p452, %p453
      %p455 = scmp.ne.s32.totalorder %s441, %s442
      %p456 = scmp.eq.s32.totalorder %s32, 3
      %p457 = por %p455, %p456
      %p459 = scmp.ne.s32.totalorder %s442, %s458
      %p460 = scmp.eq.s32.totalorder %s32, 0
      %p461 = por %p459, %p460
      %s462 = ssub.s32 %s34, %s41
      %p463 = scmp.eq.s32.totalorder %s462, 0
      %s465 = sadd.s32 %s464, 1
      %s466 = scalar_select %p463, %s464, %s465
      %p469 = pneg %p463
      %p470 = scmp.eq.s32.totalorder %s26, 3
      %p471 = por %p469, %p470
      %p472 = scmp.ne.s32.totalorder %s464, %s467
      %p473 = scmp.eq.s32.totalorder %s26, 0
      %p474 = por %p472, %p473
      %p475 = scmp.ne.s32.totalorder %s464, %s467
      %p476 = scmp.eq.s32.totalorder %s31, 3
      %p477 = por %p475, %p476
      %p478 = scmp.ne.s32.totalorder %s467, %s468
      %p479 = scmp.eq.s32.totalorder %s31, 0
      %p480 = por %p478, %p479
      %p481 = scmp.ne.s32.totalorder %s467, %s468
      %p482 = scmp.eq.s32.totalorder %s32, 3
      %p483 = por %p481, %p482
      %p485 = scmp.ne.s32.totalorder %s468, %s484
      %p486 = scmp.eq.s32.totalorder %s32, 0
      %p487 = por %p485, %p486
      %s488 = ssub.s32 %s33, %s45
      %p489 = scmp.eq.s32.totalorder %s488, 0
      %s491 = sadd.s32 %s490, 1
      %s492 = scalar_select %p489, %s490, %s491
      %p495 = pneg %p489
      %p496 = scmp.eq.s32.totalorder %s26, 3
      %p497 = por %p495, %p496
      %p498 = scmp.ne.s32.totalorder %s490, %s493
      %p499 = scmp.eq.s32.totalorder %s26, 0
      %p500 = por %p498, %p499
      %p501 = scmp.ne.s32.totalorder %s490, %s493
      %p502 = scmp.eq.s32.totalorder %s31, 3
      %p503 = por %p501, %p502
      %p504 = scmp.ne.s32.totalorder %s493, %s494
      %p505 = scmp.eq.s32.totalorder %s31, 0
      %p506 = por %p504, %p505
      %p507 = scmp.ne.s32.totalorder %s493, %s494
      %p508 = scmp.eq.s32.totalorder %s32, 3
      %p509 = por %p507, %p508
      %p511 = scmp.ne.s32.totalorder %s494, %s510
      %p512 = scmp.eq.s32.totalorder %s32, 0
      %p513 = por %p511, %p512
      %p514 = scmp.le.s32.totalorder 1, %s26
      %p515 = scmp.lt.s32.totalorder %s26, 5
      %p516 = pnand %p514, %p515
      %p517 = pneg %p516
      // Predicated region
      $region9: #{tpu_custom_call.1} parent=5 // pred_check
        _
      $region10: #{tpu_custom_call.1} parent=5 // pred_check_branch
        %519 = sbr.rel (%p516) target = $region12
      $region11: #{tpu_custom_call.1} parent=5 // pred_region
        %s520 = ssub.s32 %s26, 1
      $region12: #{tpu_custom_call.1} parent=5 // pred_fallthru
        _
      %p521 = scmp.lt.s32.totalorder %s26, 4
      // Predicated region
      $region13: #{tpu_custom_call.1} parent=5 // pred_check
        %p522 = pneg %p521
      $region14: #{tpu_custom_call.1} parent=5 // pred_check_branch
        %524 = sbr.rel (%p522) target = $region16
      $region15: #{tpu_custom_call.1} parent=5 // pred_region
        // Predicated region
        $region17: #{tpu_custom_call.1} parent=15 // pred_check
          %p525 = pneg %p58
        $region18: #{tpu_custom_call.1} parent=15 // pred_check_branch
          %527 = sbr.rel (%p525) target = $region20
        $region19: #{tpu_custom_call.1} parent=15 // pred_region
          %p528 = scmp.lt.s32.totalorder %s33, 1
          %s529 = scalar_select %p528, %s33, 1
          %s530 = smul.addr %s529, 8
          %s531 = scalar_lea.vmem %s0, %s530
        $region20: #{tpu_custom_call.1} parent=15 // pred_fallthru
          _
        // Predicated region
        $region21: #{tpu_custom_call.1} parent=15 // pred_check
          %p532 = pneg %p84
        $region22: #{tpu_custom_call.1} parent=15 // pred_check_branch
          %534 = sbr.rel (%p532) target = $region24
        $region23: #{tpu_custom_call.1} parent=15 // pred_region
          %p535 = scmp.lt.s32.totalorder %s34, 1
          %s536 = scalar_select %p535, %s34, 1
          %s537 = scalar_lea.vmem %s1, %s536
        $region24: #{tpu_custom_call.1} parent=15 // pred_fallthru
          _
        // Predicated region
        $region25: #{tpu_custom_call.1} parent=15 // pred_check
          %p538 = pneg %p110
        $region26: #{tpu_custom_call.1} parent=15 // pred_check_branch
          %540 = sbr.rel (%p538) target = $region28
        $region27: #{tpu_custom_call.1} parent=15 // pred_region
          %p541 = scmp.lt.s32.totalorder %s34, 1
          %s542 = scalar_select %p541, %s34, 1
          %s543 = scalar_lea.vmem %s2, %s542
        $region28: #{tpu_custom_call.1} parent=15 // pred_fallthru
          _
        // Predicated region
        $region29: #{tpu_custom_call.1} parent=15 // pred_check
          %p544 = pneg %p136
        $region30: #{tpu_custom_call.1} parent=15 // pred_check_branch
          %546 = sbr.rel (%p544) target = $region32
        $region31: #{tpu_custom_call.1} parent=15 // pred_region
          %p547 = scmp.lt.s32.totalorder %s34, 1
          %s548 = scalar_select %p547, %s34, 1
          %s549 = smul.addr %s548, 8
          %s550 = smul.addr %s549, 4
          %s551 = scalar_lea.vmem %s3, %s550
        $region32: #{tpu_custom_call.1} parent=15 // pred_fallthru
          _
        // Predicated region
        $region33: #{tpu_custom_call.1} parent=15 // pred_check
          %p552 = pneg %p162
        $region34: #{tpu_custom_call.1} parent=15 // pred_check_branch
          %554 = sbr.rel (%p552) target = $region36
        $region35: #{tpu_custom_call.1} parent=15 // pred_region
          %p555 = scmp.lt.s32.totalorder %s34, 1
          %s556 = scalar_select %p555, %s34, 1
          %s557 = smul.addr %s556, 2
          %s558 = scalar_lea.vmem %s4, %s557
        $region36: #{tpu_custom_call.1} parent=15 // pred_fallthru
          _
        // Predicated region
        $region37: #{tpu_custom_call.1} parent=15 // pred_check
          %p559 = pneg %p188
        $region38: #{tpu_custom_call.1} parent=15 // pred_check_branch
          %561 = sbr.rel (%p559) target = $region40
        $region39: #{tpu_custom_call.1} parent=15 // pred_region
          %p562 = scmp.lt.s32.totalorder %s34, 1
          %s563 = scalar_select %p562, %s34, 1
          %s564 = smul.addr %s563, 8
          %s565 = smul.addr %s564, 4
          %s566 = scalar_lea.vmem %s5, %s565
        $region40: #{tpu_custom_call.1} parent=15 // pred_fallthru
          _
        // Predicated region
        $region41: #{tpu_custom_call.1} parent=15 // pred_check
          %p567 = pneg %p214
        $region42: #{tpu_custom_call.1} parent=15 // pred_check_branch
          %569 = sbr.rel (%p567) target = $region44
        $region43: #{tpu_custom_call.1} parent=15 // pred_region
          %p570 = scmp.lt.s32.totalorder %s34, 1
          %s571 = scalar_select %p570, %s34, 1
          %s572 = smul.addr %s571, 2
          %s573 = scalar_lea.vmem %s6, %s572
        $region44: #{tpu_custom_call.1} parent=15 // pred_fallthru
          _
        // Predicated region
        $region45: #{tpu_custom_call.1} parent=15 // pred_check
          %p574 = pneg %p240
        $region46: #{tpu_custom_call.1} parent=15 // pred_check_branch
          %576 = sbr.rel (%p574) target = $region48
        $region47: #{tpu_custom_call.1} parent=15 // pred_region
          %p577 = scmp.lt.s32.totalorder %s34, 1
          %s578 = scalar_select %p577, %s34, 1
          %s579 = smul.addr %s578, 8
          %s580 = smul.addr %s579, 4
          %s581 = scalar_lea.vmem %s7, %s580
        $region48: #{tpu_custom_call.1} parent=15 // pred_fallthru
          _
        // Predicated region
        $region49: #{tpu_custom_call.1} parent=15 // pred_check
          %p582 = pneg %p266
        $region50: #{tpu_custom_call.1} parent=15 // pred_check_branch
          %584 = sbr.rel (%p582) target = $region52
        $region51: #{tpu_custom_call.1} parent=15 // pred_region
          %p585 = scmp.lt.s32.totalorder %s34, 1
          %s586 = scalar_select %p585, %s34, 1
          %s587 = smul.addr %s586, 2
          %s588 = scalar_lea.vmem %s8, %s587
        $region52: #{tpu_custom_call.1} parent=15 // pred_fallthru
          _
        // Predicated region
        $region53: #{tpu_custom_call.1} parent=15 // pred_check
          %p589 = pneg %p292
        $region54: #{tpu_custom_call.1} parent=15 // pred_check_branch
          %591 = sbr.rel (%p589) target = $region56
        $region55: #{tpu_custom_call.1} parent=15 // pred_region
          %p592 = scmp.lt.s32.totalorder %s34, 1
          %s593 = scalar_select %p592, %s34, 1
          %s594 = smul.addr %s593, 4
          %s595 = smul.addr %s594, 4
          %s596 = scalar_lea.vmem %s9, %s595
        $region56: #{tpu_custom_call.1} parent=15 // pred_fallthru
          _
        // Predicated region
        $region57: #{tpu_custom_call.1} parent=15 // pred_check
          %p597 = pneg %p318
        $region58: #{tpu_custom_call.1} parent=15 // pred_check_branch
          %599 = sbr.rel (%p597) target = $region60
        $region59: #{tpu_custom_call.1} parent=15 // pred_region
          %p600 = scmp.lt.s32.totalorder %s34, 1
          %s601 = scalar_select %p600, %s34, 1
          %s602 = scalar_lea.vmem %s10, %s601
        $region60: #{tpu_custom_call.1} parent=15 // pred_fallthru
          _
        // Predicated region
        $region61: #{tpu_custom_call.1} parent=15 // pred_check
          %p603 = pneg %p344
        $region62: #{tpu_custom_call.1} parent=15 // pred_check_branch
          %605 = sbr.rel (%p603) target = $region64
        $region63: #{tpu_custom_call.1} parent=15 // pred_region
          %p606 = scmp.lt.s32.totalorder %s34, 1
          %s607 = scalar_select %p606, %s34, 1
          %s608 = scalar_lea.vmem %s11, %s607
        $region64: #{tpu_custom_call.1} parent=15 // pred_fallthru
          _
        // Predicated region
        $region65: #{tpu_custom_call.1} parent=15 // pred_check
          %p609 = pneg %p370
        $region66: #{tpu_custom_call.1} parent=15 // pred_check_branch
          %611 = sbr.rel (%p609) target = $region68
        $region67: #{tpu_custom_call.1} parent=15 // pred_region
          %p612 = scmp.lt.s32.totalorder %s34, 1
          %s613 = scalar_select %p612, %s34, 1
          %s614 = scalar_lea.vmem %s12, %s613
        $region68: #{tpu_custom_call.1} parent=15 // pred_fallthru
          _
        // Predicated region
        $region69: #{tpu_custom_call.1} parent=15 // pred_check
          %p615 = pneg %p396
        $region70: #{tpu_custom_call.1} parent=15 // pred_check_branch
          %617 = sbr.rel (%p615) target = $region72
        $region71: #{tpu_custom_call.1} parent=15 // pred_region
          %p618 = scmp.lt.s32.totalorder %s34, 1
          %s619 = scalar_select %p618, %s34, 1
          %s620 = smul.addr %s619, 4
          %s621 = smul.addr %s620, 4
          %s622 = scalar_lea.vmem %s13, %s621
        $region72: #{tpu_custom_call.1} parent=15 // pred_fallthru
          _
        // Predicated region
        $region73: #{tpu_custom_call.1} parent=15 // pred_check
          %p623 = pneg %p422
        $region74: #{tpu_custom_call.1} parent=15 // pred_check_branch
          %625 = sbr.rel (%p623) target = $region76
        $region75: #{tpu_custom_call.1} parent=15 // pred_region
          %p626 = scmp.lt.s32.totalorder %s34, 1
          %s627 = scalar_select %p626, %s34, 1
          %s628 = scalar_lea.vmem %s14, %s627
        $region76: #{tpu_custom_call.1} parent=15 // pred_fallthru
          _
        // Predicated region
        $region77: #{tpu_custom_call.1} parent=15 // pred_check
          %p629 = pneg %p448
        $region78: #{tpu_custom_call.1} parent=15 // pred_check_branch
          %631 = sbr.rel (%p629) target = $region80
        $region79: #{tpu_custom_call.1} parent=15 // pred_region
          %p632 = scmp.lt.s32.totalorder %s34, 1
          %s633 = scalar_select %p632, %s34, 1
          %s634 = smul.addr %s633, 16
          %s635 = smul.addr %s634, 4
          %s636 = scalar_lea.vmem %s15, %s635
        $region80: #{tpu_custom_call.1} parent=15 // pred_fallthru
          _
        // Predicated region
        $region81: #{tpu_custom_call.1} parent=15 // pred_check
          %p637 = pneg %p474
        $region82: #{tpu_custom_call.1} parent=15 // pred_check_branch
          %639 = sbr.rel (%p637) target = $region84
        $region83: #{tpu_custom_call.1} parent=15 // pred_region
          %p640 = scmp.lt.s32.totalorder %s34, 1
          %s641 = scalar_select %p640, %s34, 1
          %s642 = scalar_lea.vmem %s16, %s641
        $region84: #{tpu_custom_call.1} parent=15 // pred_fallthru
          _
      $region16: #{tpu_custom_call.1} parent=5 // pred_fallthru
        _
      %p643 = scmp.le.s32.totalorder 1, %s26
      %p644 = scmp.lt.s32.totalorder %s26, 5
      %p645 = pnand %p643, %p644
      %p646 = pneg %p645
      // Predicated region
      $region85: #{tpu_custom_call.1} parent=5 // pred_check
        _
      $region86: #{tpu_custom_call.1} parent=5 // pred_check_branch
        %648 = sbr.rel (%p645) target = $region88
      $region87: #{tpu_custom_call.1} parent=5 // pred_region
        %s649 = ssub.s32 %s26, 1
        %p650 = scmp.lt.s32.totalorder %s35, 1
        %s651 = scalar_select %p650, %s35, 1
        %s652 = smul.addr %s651, 8
        %s653 = scalar_lea.vmem %s0, %s652
        %p654 = pneg %p64
        %p655 = pneg %p61
        %p656 = scmp.lt.s32.totalorder %s36, 1
        %s657 = scalar_select %p656, %s36, 1
        %s658 = scalar_lea.vmem %s1, %s657
        %p659 = pneg %p90
        %p660 = pneg %p87
        %p661 = scmp.lt.s32.totalorder %s36, 1
        %s662 = scalar_select %p661, %s36, 1
        %s663 = scalar_lea.vmem %s2, %s662
        %p664 = pneg %p116
        %p665 = pneg %p113
        %p666 = scmp.lt.s32.totalorder %s36, 1
        %s667 = scalar_select %p666, %s36, 1
        %s668 = smul.addr %s667, 8
        %s669 = smul.addr %s668, 4
        %s670 = scalar_lea.vmem %s3, %s669
        %p671 = pneg %p142
        %p672 = pneg %p139
        %p673 = scmp.lt.s32.totalorder %s36, 1
        %s674 = scalar_select %p673, %s36, 1
        %s675 = smul.addr %s674, 2
        %s676 = scalar_lea.vmem %s4, %s675
        %p677 = pneg %p168
        %p678 = pneg %p165
        %p679 = scmp.lt.s32.totalorder %s36, 1
        %s680 = scalar_select %p679, %s36, 1
        %s681 = smul.addr %s680, 8
        %s682 = smul.addr %s681, 4
        %s683 = scalar_lea.vmem %s5, %s682
        %p684 = pneg %p194
        %p685 = pneg %p191
        %p686 = scmp.lt.s32.totalorder %s36, 1
        %s687 = scalar_select %p686, %s36, 1
        %s688 = smul.addr %s687, 2
        %s689 = scalar_lea.vmem %s6, %s688
        %p690 = pneg %p220
        %p691 = pneg %p217
        %p692 = scmp.lt.s32.totalorder %s36, 1
        %s693 = scalar_select %p692, %s36, 1
        %s694 = smul.addr %s693, 8
        %s695 = smul.addr %s694, 4
        %s696 = scalar_lea.vmem %s7, %s695
        %p697 = pneg %p246
        %p698 = pneg %p243
        %p699 = scmp.lt.s32.totalorder %s36, 1
        %s700 = scalar_select %p699, %s36, 1
        %s701 = smul.addr %s700, 2
        %s702 = scalar_lea.vmem %s8, %s701
        %p703 = pneg %p272
        %p704 = pneg %p269
        %p705 = scmp.lt.s32.totalorder %s36, 1
        %s706 = scalar_select %p705, %s36, 1
        %s707 = smul.addr %s706, 4
        %s708 = smul.addr %s707, 4
        %s709 = scalar_lea.vmem %s9, %s708
        %p710 = pneg %p298
        %p711 = pneg %p295
        %p712 = scmp.lt.s32.totalorder %s36, 1
        %s713 = scalar_select %p712, %s36, 1
        %s714 = scalar_lea.vmem %s10, %s713
        %p715 = pneg %p324
        %p716 = pneg %p321
        %p717 = scmp.lt.s32.totalorder %s36, 1
        %s718 = scalar_select %p717, %s36, 1
        %s719 = scalar_lea.vmem %s11, %s718
        %p720 = pneg %p350
        %p721 = pneg %p347
        %p722 = scmp.lt.s32.totalorder %s36, 1
        %s723 = scalar_select %p722, %s36, 1
        %s724 = scalar_lea.vmem %s12, %s723
        %p725 = pneg %p376
        %p726 = pneg %p373
        %p727 = scmp.lt.s32.totalorder %s36, 1
        %s728 = scalar_select %p727, %s36, 1
        %s729 = smul.addr %s728, 4
        %s730 = smul.addr %s729, 4
        %s731 = scalar_lea.vmem %s13, %s730
        %p732 = pneg %p402
        %p733 = pneg %p399
        %p734 = scmp.lt.s32.totalorder %s36, 1
        %s735 = scalar_select %p734, %s36, 1
        %s736 = scalar_lea.vmem %s14, %s735
        %p737 = pneg %p428
        %p738 = pneg %p425
        %p739 = scmp.lt.s32.totalorder %s36, 1
        %s740 = scalar_select %p739, %s36, 1
        %s741 = smul.addr %s740, 16
        %s742 = smul.addr %s741, 4
        %s743 = scalar_lea.vmem %s15, %s742
        %p744 = pneg %p454
        %p745 = pneg %p451
        %p746 = scmp.lt.s32.totalorder %s36, 1
        %s747 = scalar_select %p746, %s36, 1
        %s748 = scalar_lea.vmem %s16, %s747
        %p749 = pneg %p480
        %p750 = pneg %p477
        %p751 = pneg %p506
        %p752 = pneg %p503
        %s753 = sand.u32 %s493, 1
        %s754 = scalar_lea.sflag [#allocation3], %s753
        %s755 = sand.u32 %s493, 1
        %s756 = smul.addr %s755, 8
        %s757 = scalar_lea.vmem [#allocation2], %s756
        %p758 = scmp.lt.s32.totalorder %s35, 1
        %s759 = scalar_select %p758, %s35, 1
        %s760 = smul.addr %s759, 8
        %s761 = scalar_lea.vmem %s0, %s760
        %p762 = scmp.lt.s32.totalorder %s36, 1
        %s763 = scalar_select %p762, %s36, 1
        %s764 = scalar_lea.vmem %s1, %s763
        %p765 = scmp.lt.s32.totalorder %s36, 1
        %s766 = scalar_select %p765, %s36, 1
        %s767 = scalar_lea.vmem %s2, %s766
        %p768 = scmp.lt.s32.totalorder %s36, 1
        %s769 = scalar_select %p768, %s36, 1
        %s770 = smul.addr %s769, 8
        %s771 = smul.addr %s770, 4
        %s772 = scalar_lea.vmem %s3, %s771
        %p773 = scmp.lt.s32.totalorder %s36, 1
        %s774 = scalar_select %p773, %s36, 1
        %s775 = smul.addr %s774, 2
        %s776 = scalar_lea.vmem %s4, %s775
        %p777 = scmp.lt.s32.totalorder %s36, 1
        %s778 = scalar_select %p777, %s36, 1
        %s779 = smul.addr %s778, 8
        %s780 = smul.addr %s779, 4
        %s781 = scalar_lea.vmem %s5, %s780
        %p782 = scmp.lt.s32.totalorder %s36, 1
        %s783 = scalar_select %p782, %s36, 1
        %s784 = smul.addr %s783, 2
        %s785 = scalar_lea.vmem %s6, %s784
        %p786 = scmp.lt.s32.totalorder %s36, 1
        %s787 = scalar_select %p786, %s36, 1
        %s788 = smul.addr %s787, 8
        %s789 = smul.addr %s788, 4
        %s790 = scalar_lea.vmem %s7, %s789
        %p791 = scmp.lt.s32.totalorder %s36, 1
        %s792 = scalar_select %p791, %s36, 1
        %s793 = smul.addr %s792, 2
        %s794 = scalar_lea.vmem %s8, %s793
        %p795 = scmp.lt.s32.totalorder %s36, 1
        %s796 = scalar_select %p795, %s36, 1
        %s797 = smul.addr %s796, 4
        %s798 = smul.addr %s797, 4
        %s799 = scalar_lea.vmem %s9, %s798
        %p800 = scmp.lt.s32.totalorder %s36, 1
        %s801 = scalar_select %p800, %s36, 1
        %s802 = scalar_lea.vmem %s10, %s801
        %p803 = scmp.lt.s32.totalorder %s36, 1
        %s804 = scalar_select %p803, %s36, 1
        %s805 = scalar_lea.vmem %s11, %s804
        %p806 = scmp.lt.s32.totalorder %s36, 1
        %s807 = scalar_select %p806, %s36, 1
        %s808 = scalar_lea.vmem %s12, %s807
        %p809 = scmp.lt.s32.totalorder %s36, 1
        %s810 = scalar_select %p809, %s36, 1
        %s811 = smul.addr %s810, 4
        %s812 = smul.addr %s811, 4
        %s813 = scalar_lea.vmem %s13, %s812
        %p814 = scmp.lt.s32.totalorder %s36, 1
        %s815 = scalar_select %p814, %s36, 1
        %s816 = scalar_lea.vmem %s14, %s815
        %p817 = scmp.lt.s32.totalorder %s36, 1
        %s818 = scalar_select %p817, %s36, 1
        %s819 = smul.addr %s818, 16
        %s820 = smul.addr %s819, 4
        %s821 = scalar_lea.vmem %s15, %s820
        %p822 = scmp.lt.s32.totalorder %s36, 1
        %s823 = scalar_select %p822, %s36, 1
        %s824 = scalar_lea.vmem %s16, %s823
        %p826 = scmp.eq.s32.totalorder %s36, 0
        // Predicated region
        $region89: #{tpu_custom_call.1} parent=87 // pred_check
          %p827 = pneg %p826
        $region90: #{tpu_custom_call.1} parent=87 // pred_check_branch
          %829 = sbr.rel (%p827) target = $region92
        $region91: #{tpu_custom_call.1} parent=87 // pred_region
          %v830 = vld [vmem:[%s761] sm:$0xff]
          %vm831 = vcmask 261120
          %832 = vst.msk [vmem:[%s757] sm:$0xff] %vm831, %v830
        $region92: #{tpu_custom_call.1} parent=87 // pred_fallthru
          _
        %v833 = vld [vmem:[%s757] sm:$0xff]
        %v834 = vld [vmem:[%s764] sm:$0x1]
        %v835 = vld [vmem:[%s767] sm:$0x1]
        %vm836 = vcmask 261120
        %v837 = vsel %vm836, %v833, 0.0
        %838 = vadd.xlane.f32.xlu0 %v837
        %v839 = vpop.xlane.xlu0 %838
        %v840 = vrcp.pop 32.0
        %v841 = vmul.f32 32.0, %v840
        %v842 = vsub.f32 1.0, %v841
        %v843 = vmul.f32 %v840, %v842
        %v844 = vadd.f32 %v840, %v843
        %vm845 = vweird.f32 %v840
        %v846 = vsel %vm845, %v840, %v844
        %v847 = vmul.f32 %v839, %v846
        %v848 = vsub.f32 %v833, %v847
        %v849 = vmul.f32 %v848, %v848
        %v850 = vsel %vm836, %v849, 0.0
        %851 = vadd.xlane.f32.xlu0 %v850
        %v852 = vpop.xlane.xlu0 %851
        %v853 = vmul.f32 %v852, %v846
        %v854 = vadd.f32 %v853, 1e-05
        %v855 = vrsqrt.pop %v854
        %v856 = vmul.f32 %v855, %v854
        %v857 = vmul.f32 %v856, %v855
        %v858 = vmul.f32 0.5, %v857
        %v859 = vsub.f32 1.5, %v858
        %v860 = vmul.f32 %v855, %v859
        %vm861 = vweird.f32 %v854
        %vm862 = vweird.f32 %v855
        %vm863 = vmor %vm861, %vm862
        %v864 = vsel %vm863, %v855, %v860
        %v865 = vmul.f32 %v848, %v864
        %v867 = vperm.slane %v834, 0
        %v869 = vmul.f32 %v865, %v867
        %v871 = vperm.slane %v835, 0
        %v873 = vadd.f32 %v869, %v871
        %v874 = vpack.c.bf16 %v873, %v873
        %v875 = vlaneseq
        %v876 = vshrl.u32 %v875, 7
        %v877 = vlaneseq
        %v878 = vand.u32 %v877, 127
        %vm879 = vcmp.le.s32.totalorder %v878, %v876
        %v880 = vld [vmem:[%s772] sm:$0xf]
        %v881 = vld [vmem:[%s772 + $0x4] sm:$0xf]
        %v882 = vld [vmem:[%s772 + $0x8] sm:$0xf]
        %v883 = vld [vmem:[%s772 + $0xc] sm:$0xf]
        %v884 = vld [vmem:[%s776] sm:$0x1]
        %v886 = vperm.slane %v884, 0
        %v892 = vunpack.c.l.b16 %v880
        %v893 = vunpack.c.l.b16 %v881
        %v894 = vunpack.c.l.b16 %v882
        %v895 = vunpack.c.l.b16 %v883
        %v896 = vpack.c.b16 %v893, %v892
        %v897 = vpack.c.b16 %v895, %v894
        %v901 = vsel %vm836, %v874, 0
        %903 = vmatpush.bf16.msra.mxu0 0
        %904 = vmatpush.bf16.msra.mxu0 0
        %905 = vmatpush.bf16.msra.mxu0 0
        %906 = vmatpush.bf16.msra.mxu0 0
        %907 = vmatpush.bf16.msra.mxu0 0
        %908 = vmatpush.bf16.msra.mxu0 0
        %909 = vmatpush.bf16.msra.mxu0 %v897
        %910 = vmatpush.bf16.msra.mxu0 %v896
        %911 = vmatmul.bf16.gmra.mxu0 %v901
        %v912 = vpop.f32.mrf.mxu0
        %v913 = vadd.f32 %v886, %v912
        %v914 = vpop.f32.mrf.mxu0
        %915 = vdwg.mxu0
        %v916 = vld [vmem:[%s781] sm:$0xf]
        %v917 = vld [vmem:[%s781 + $0x4] sm:$0xf]
        %v918 = vld [vmem:[%s781 + $0x8] sm:$0xf]
        %v919 = vld [vmem:[%s781 + $0xc] sm:$0xf]
        %v920 = vld [vmem:[%s785] sm:$0x1]
        %v922 = vperm.slane %v920, 0
        %v928 = vunpack.c.l.b16 %v916
        %v929 = vunpack.c.l.b16 %v917
        %v930 = vunpack.c.l.b16 %v918
        %v931 = vunpack.c.l.b16 %v919
        %v932 = vpack.c.b16 %v929, %v928
        %v933 = vpack.c.b16 %v931, %v930
        %936 = vmatpush.bf16.msra.mxu0 0
        %937 = vmatpush.bf16.msra.mxu0 0
        %938 = vmatpush.bf16.msra.mxu0 0
        %939 = vmatpush.bf16.msra.mxu0 0
        %940 = vmatpush.bf16.msra.mxu0 0
        %941 = vmatpush.bf16.msra.mxu0 0
        %942 = vmatpush.bf16.msra.mxu0 %v933
        %943 = vmatpush.bf16.msra.mxu0 %v932
        %944 = vmatmul.bf16.gmra.mxu0 %v901
        %v945 = vpop.f32.mrf.mxu0
        %v946 = vadd.f32 %v922, %v945
        %v947 = vpop.f32.mrf.mxu0
        %948 = vdwg.mxu0
        %v949 = vld [vmem:[%s790] sm:$0xf]
        %v950 = vld [vmem:[%s790 + $0x4] sm:$0xf]
        %v951 = vld [vmem:[%s790 + $0x8] sm:$0xf]
        %v952 = vld [vmem:[%s790 + $0xc] sm:$0xf]
        %v953 = vld [vmem:[%s794] sm:$0x1]
        %v955 = vperm.slane %v953, 0
        %v961 = vunpack.c.l.b16 %v949
        %v962 = vunpack.c.l.b16 %v950
        %v963 = vunpack.c.l.b16 %v951
        %v964 = vunpack.c.l.b16 %v952
        %v965 = vpack.c.b16 %v962, %v961
        %v966 = vpack.c.b16 %v964, %v963
        %969 = vmatpush.bf16.msra.mxu0 0
        %970 = vmatpush.bf16.msra.mxu0 0
        %971 = vmatpush.bf16.msra.mxu0 0
        %972 = vmatpush.bf16.msra.mxu0 0
        %973 = vmatpush.bf16.msra.mxu0 0
        %974 = vmatpush.bf16.msra.mxu0 0
        %975 = vmatpush.bf16.msra.mxu0 %v966
        %976 = vmatpush.bf16.msra.mxu0 %v965
        %977 = vmatmul.bf16.gmra.mxu0 %v901
        %v978 = vpop.f32.mrf.mxu0
        %v979 = vadd.f32 %v955, %v978
        %v980 = vpop.f32.mrf.mxu0
        %981 = vdwg.mxu0
        %v982 = vpack.c.bf16 %v913, %v913
        %v983 = vpack.c.bf16 %v946, %v946
        %vm984 = vcmask 130048
        %v986 = vsel %vm984, %v982, 0
        %v989 = vsel %vm984, %v983, 0
        %991 = vmatpush.bf16.xpose.msra.mxu0 0
        %992 = vmatpush.bf16.xpose.msra.mxu0 0
        %993 = vmatpush.bf16.xpose.msra.mxu0 0
        %994 = vmatpush.bf16.xpose.msra.mxu0 0
        %995 = vmatpush.bf16.xpose.msra.mxu0 0
        %996 = vmatpush.bf16.xpose.msra.mxu0 0
        %997 = vmatpush.bf16.xpose.msra.mxu0 0
        %998 = vmatpush.bf16.xpose.msra.mxu0 %v989
        %999 = vmatmul.bf16.gmra.mxu0 %v986
        %v1000 = vpop.f32.mrf.mxu0
        %v1001 = vadd.f32 0.0, %v1000
        %v1002 = vpop.f32.mrf.mxu0
        %1003 = vdwg.mxu0
        %v1004 = vsel %vm879, %v1001, -1e+30
        %vm1005 = vcmask 64512
        %v1006 = vsel %vm1005, %v1004, -inf
        %1007 = vmax.xlane.f32.xlu0 %v1006
        %v1008 = vpop.xlane.xlu0 %1007
        %v1009 = vsub.f32 %v1004, %v1008
        %v1010 = vmul.f32 %v1009, 1.442695
        %v1011 = vpow.pop %v1010
        %v1012 = vsel %vm1005, %v1011, 0.0
        %1013 = vadd.xlane.f32.xlu0 %v1012
        %v1014 = vpop.xlane.xlu0 %1013
        %v1015 = vrcp.pop %v1014
        %v1016 = vmul.f32 %v1011, %v1015
        %v1017 = vpack.c.bf16 %v1016, %v1016
        %v1018 = vpack.c.bf16 %v979, %v979
        %v1020 = vsel %vm1005, %v1017, 0
        %vm1022 = vcmask 1043456
        %v1024 = vsel %vm1022, %v1018, 0
        %1026 = vmatpush.bf16.msra.mxu0 0
        %1027 = vmatpush.bf16.msra.mxu0 0
        %1028 = vmatpush.bf16.msra.mxu0 0
        %1029 = vmatpush.bf16.msra.mxu0 0
        %1030 = vmatpush.bf16.msra.mxu0 0
        %1031 = vmatpush.bf16.msra.mxu0 0
        %1032 = vmatpush.bf16.msra.mxu0 0
        %1033 = vmatpush.bf16.msra.mxu0 %v1024
        %1034 = vmatmul.bf16.gmra.mxu0 %v1020
        %v1035 = vpop.f32.mrf.mxu0
        %v1036 = vadd.f32 0.0, %v1035
        %v1037 = vpop.f32.mrf.mxu0
        %1038 = vdwg.mxu0
        %v1039 = vpack.c.bf16 %v1036, %v1036
        %v1040 = vld [vmem:[%s799] sm:$0xf]
        %v1041 = vld [vmem:[%s799 + $0x4] sm:$0xf]
        %s1042 = scalar_lea.vmem %s772, 16
        %v1043 = vld [vmem:[%s1042] sm:$0xf]
        %v1044 = vld [vmem:[%s1042 + $0x4] sm:$0xf]
        %v1045 = vld [vmem:[%s1042 + $0x8] sm:$0xf]
        %v1046 = vld [vmem:[%s1042 + $0xc] sm:$0xf]
        %s1047 = scalar_lea.vmem %s776, 1
        %v1048 = vld [vmem:[%s1047] sm:$0x1]
        %v1050 = vperm.slane %v1048, 0
        %v1056 = vunpack.c.l.b16 %v1043
        %v1057 = vunpack.c.l.b16 %v1044
        %v1058 = vunpack.c.l.b16 %v1045
        %v1059 = vunpack.c.l.b16 %v1046
        %v1060 = vpack.c.b16 %v1057, %v1056
        %v1061 = vpack.c.b16 %v1059, %v1058
        %1064 = vmatpush.bf16.msra.mxu0 0
        %1065 = vmatpush.bf16.msra.mxu0 0
        %1066 = vmatpush.bf16.msra.mxu0 0
        %1067 = vmatpush.bf16.msra.mxu0 0
        %1068 = vmatpush.bf16.msra.mxu0 0
        %1069 = vmatpush.bf16.msra.mxu0 0
        %1070 = vmatpush.bf16.msra.mxu0 %v1061
        %1071 = vmatpush.bf16.msra.mxu0 %v1060
        %1072 = vmatmul.bf16.gmra.mxu0 %v901
        %v1073 = vpop.f32.mrf.mxu0
        %v1074 = vadd.f32 %v1050, %v1073
        %v1075 = vpop.f32.mrf.mxu0
        %1076 = vdwg.mxu0
        %s1077 = scalar_lea.vmem %s781, 16
        %v1078 = vld [vmem:[%s1077] sm:$0xf]
        %v1079 = vld [vmem:[%s1077 + $0x4] sm:$0xf]
        %v1080 = vld [vmem:[%s1077 + $0x8] sm:$0xf]
        %v1081 = vld [vmem:[%s1077 + $0xc] sm:$0xf]
        %s1082 = scalar_lea.vmem %s785, 1
        %v1083 = vld [vmem:[%s1082] sm:$0x1]
        %v1085 = vperm.slane %v1083, 0
        %v1091 = vunpack.c.l.b16 %v1078
        %v1092 = vunpack.c.l.b16 %v1079
        %v1093 = vunpack.c.l.b16 %v1080
        %v1094 = vunpack.c.l.b16 %v1081
        %v1095 = vpack.c.b16 %v1092, %v1091
        %v1096 = vpack.c.b16 %v1094, %v1093
        %1099 = vmatpush.bf16.msra.mxu0 0
        %1100 = vmatpush.bf16.msra.mxu0 0
        %1101 = vmatpush.bf16.msra.mxu0 0
        %1102 = vmatpush.bf16.msra.mxu0 0
        %1103 = vmatpush.bf16.msra.mxu0 0
        %1104 = vmatpush.bf16.msra.mxu0 0
        %1105 = vmatpush.bf16.msra.mxu0 %v1096
        %1106 = vmatpush.bf16.msra.mxu0 %v1095
        %1107 = vmatmul.bf16.gmra.mxu0 %v901
        %v1108 = vpop.f32.mrf.mxu0
        %v1109 = vadd.f32 %v1085, %v1108
        %v1110 = vpop.f32.mrf.mxu0
        %1111 = vdwg.mxu0
        %s1112 = scalar_lea.vmem %s790, 16
        %v1113 = vld [vmem:[%s1112] sm:$0xf]
        %v1114 = vld [vmem:[%s1112 + $0x4] sm:$0xf]
        %v1115 = vld [vmem:[%s1112 + $0x8] sm:$0xf]
        %v1116 = vld [vmem:[%s1112 + $0xc] sm:$0xf]
        %s1117 = scalar_lea.vmem %s794, 1
        %v1118 = vld [vmem:[%s1117] sm:$0x1]
        %v1120 = vperm.slane %v1118, 0
        %v1126 = vunpack.c.l.b16 %v1113
        %v1127 = vunpack.c.l.b16 %v1114
        %v1128 = vunpack.c.l.b16 %v1115
        %v1129 = vunpack.c.l.b16 %v1116
        %v1130 = vpack.c.b16 %v1127, %v1126
        %v1131 = vpack.c.b16 %v1129, %v1128
        %1134 = vmatpush.bf16.msra.mxu0 0
        %1135 = vmatpush.bf16.msra.mxu0 0
        %1136 = vmatpush.bf16.msra.mxu0 0
        %1137 = vmatpush.bf16.msra.mxu0 0
        %1138 = vmatpush.bf16.msra.mxu0 0
        %1139 = vmatpush.bf16.msra.mxu0 0
        %1140 = vmatpush.bf16.msra.mxu0 %v1131
        %1141 = vmatpush.bf16.msra.mxu0 %v1130
        %1142 = vmatmul.bf16.gmra.mxu0 %v901
        %v1143 = vpop.f32.mrf.mxu0
        %v1144 = vadd.f32 %v1120, %v1143
        %v1145 = vpop.f32.mrf.mxu0
        %1146 = vdwg.mxu0
        %v1147 = vpack.c.bf16 %v1074, %v1074
        %v1148 = vpack.c.bf16 %v1109, %v1109
        %v1150 = vsel %vm984, %v1147, 0
        %v1153 = vsel %vm984, %v1148, 0
        %1155 = vmatpush.bf16.xpose.msra.mxu0 0
        %1156 = vmatpush.bf16.xpose.msra.mxu0 0
        %1157 = vmatpush.bf16.xpose.msra.mxu0 0
        %1158 = vmatpush.bf16.xpose.msra.mxu0 0
        %1159 = vmatpush.bf16.xpose.msra.mxu0 0
        %1160 = vmatpush.bf16.xpose.msra.mxu0 0
        %1161 = vmatpush.bf16.xpose.msra.mxu0 0
        %1162 = vmatpush.bf16.xpose.msra.mxu0 %v1153
        %1163 = vmatmul.bf16.gmra.mxu0 %v1150
        %v1164 = vpop.f32.mrf.mxu0
        %v1165 = vadd.f32 0.0, %v1164
        %v1166 = vpop.f32.mrf.mxu0
        %1167 = vdwg.mxu0
        %v1168 = vsel %vm879, %v1165, -1e+30
        %v1169 = vsel %vm1005, %v1168, -inf
        %1170 = vmax.xlane.f32.xlu0 %v1169
        %v1171 = vpop.xlane.xlu0 %1170
        %v1172 = vsub.f32 %v1168, %v1171
        %v1173 = vmul.f32 %v1172, 1.442695
        %v1174 = vpow.pop %v1173
        %v1175 = vsel %vm1005, %v1174, 0.0
        %1176 = vadd.xlane.f32.xlu0 %v1175
        %v1177 = vpop.xlane.xlu0 %1176
        %v1178 = vrcp.pop %v1177
        %v1179 = vmul.f32 %v1174, %v1178
        %v1180 = vpack.c.bf16 %v1179, %v1179
        %v1181 = vpack.c.bf16 %v1144, %v1144
        %v1183 = vsel %vm1005, %v1180, 0
        %v1186 = vsel %vm1022, %v1181, 0
        %1188 = vmatpush.bf16.msra.mxu0 0
        %1189 = vmatpush.bf16.msra.mxu0 0
        %1190 = vmatpush.bf16.msra.mxu0 0
        %1191 = vmatpush.bf16.msra.mxu0 0
        %1192 = vmatpush.bf16.msra.mxu0 0
        %1193 = vmatpush.bf16.msra.mxu0 0
        %1194 = vmatpush.bf16.msra.mxu0 0
        %1195 = vmatpush.bf16.msra.mxu0 %v1186
        %1196 = vmatmul.bf16.gmra.mxu0 %v1183
        %v1197 = vpop.f32.mrf.mxu0
        %v1198 = vadd.f32 0.0, %v1197
        %v1199 = vpop.f32.mrf.mxu0
        %1200 = vdwg.mxu0
        %v1201 = vpack.c.bf16 %v1198, %v1198
        %s1202 = scalar_lea.vmem %s799, 8
        %v1203 = vld [vmem:[%s1202] sm:$0xf]
        %v1204 = vld [vmem:[%s1202 + $0x4] sm:$0xf]
        %v1207 = vunpack.c.l.b16 %v1203
        %v1208 = vunpack.c.l.b16 %v1204
        %v1209 = vpack.c.b16 %v1208, %v1207
        %v1212 = vsel %vm984, %v1201, 0
        %1214 = vmatpush.bf16.msra.mxu0 0
        %1215 = vmatpush.bf16.msra.mxu0 0
        %1216 = vmatpush.bf16.msra.mxu0 0
        %1217 = vmatpush.bf16.msra.mxu0 0
        %1218 = vmatpush.bf16.msra.mxu0 0
        %1219 = vmatpush.bf16.msra.mxu0 0
        %1220 = vmatpush.bf16.msra.mxu0 0
        %1221 = vmatpush.bf16.msra.mxu0 %v1209
        %1222 = vmatmul.bf16.gmra.mxu0 %v1212
        %v1223 = vpop.f32.mrf.mxu0
        %v1224 = vadd.f32 0.0, %v1223
        %v1225 = vpop.f32.mrf.mxu0
        %1226 = vdwg.mxu0
        %v1229 = vunpack.c.l.b16 %v1040
        %v1230 = vunpack.c.l.b16 %v1041
        %v1231 = vpack.c.b16 %v1230, %v1229
        %v1234 = vsel %vm984, %v1039, 0
        %1236 = vmatpush.bf16.msra.mxu0 0
        %1237 = vmatpush.bf16.msra.mxu0 0
        %1238 = vmatpush.bf16.msra.mxu0 0
        %1239 = vmatpush.bf16.msra.mxu0 0
        %1240 = vmatpush.bf16.msra.mxu0 0
        %1241 = vmatpush.bf16.msra.mxu0 0
        %1242 = vmatpush.bf16.msra.mxu0 0
        %1243 = vmatpush.bf16.msra.mxu0 %v1231
        %1244 = vmatmul.bf16.gmra.mxu0 %v1234
        %v1245 = vpop.f32.mrf.mxu0
        %v1246 = vadd.f32 %v1224, %v1245
        %v1247 = vpop.f32.mrf.mxu0
        %1248 = vdwg.mxu0
        %v1249 = vadd.f32 %v833, %v1246
        %v1250 = vld [vmem:[%s802] sm:$0x1]
        %v1252 = vperm.slane %v1250, 0
        %v1254 = vadd.f32 %v1249, %v1252
        %v1255 = vld [vmem:[%s805] sm:$0x1]
        %v1256 = vld [vmem:[%s808] sm:$0x1]
        %v1257 = vsel %vm836, %v1254, 0.0
        %1258 = vadd.xlane.f32.xlu0 %v1257
        %v1259 = vpop.xlane.xlu0 %1258
        %v1260 = vmul.f32 %v1259, %v846
        %v1261 = vsub.f32 %v1254, %v1260
        %v1262 = vmul.f32 %v1261, %v1261
        %v1263 = vsel %vm836, %v1262, 0.0
        %1264 = vadd.xlane.f32.xlu0 %v1263
        %v1265 = vpop.xlane.xlu0 %1264
        %v1266 = vmul.f32 %v1265, %v846
        %v1267 = vadd.f32 %v1266, 1e-05
        %v1268 = vrsqrt.pop %v1267
        %v1269 = vmul.f32 %v1268, %v1267
        %v1270 = vmul.f32 %v1269, %v1268
        %v1271 = vmul.f32 0.5, %v1270
        %v1272 = vsub.f32 1.5, %v1271
        %v1273 = vmul.f32 %v1268, %v1272
        %vm1274 = vweird.f32 %v1267
        %vm1275 = vweird.f32 %v1268
        %vm1276 = vmor %vm1274, %vm1275
        %v1277 = vsel %vm1276, %v1268, %v1273
        %v1278 = vmul.f32 %v1261, %v1277
        %v1280 = vperm.slane %v1255, 0
        %v1282 = vmul.f32 %v1278, %v1280
        %v1284 = vperm.slane %v1256, 0
        %v1286 = vadd.f32 %v1282, %v1284
        %v1287 = vpack.c.bf16 %v1286, %v1286
        %v1288 = vld [vmem:[%s813] sm:$0xf]
        %v1289 = vld [vmem:[%s813 + $0x4] sm:$0xf]
        %v1290 = vld [vmem:[%s813 + $0x8] sm:$0xf]
        %v1291 = vld [vmem:[%s813 + $0xc] sm:$0xf]
        %v1292 = vld [vmem:[%s816] sm:$0x1]
        %v1294 = vperm.slane %v1292, 0
        %v1300 = vunpack.c.l.b16 %v1288
        %v1301 = vunpack.c.l.b16 %v1289
        %v1302 = vunpack.c.l.b16 %v1290
        %v1303 = vunpack.c.l.b16 %v1291
        %v1304 = vpack.c.b16 %v1301, %v1300
        %v1305 = vpack.c.b16 %v1303, %v1302
        %v1309 = vsel %vm836, %v1287, 0
        %1311 = vmatpush.bf16.msra.mxu0 0
        %1312 = vmatpush.bf16.msra.mxu0 0
        %1313 = vmatpush.bf16.msra.mxu0 0
        %1314 = vmatpush.bf16.msra.mxu0 0
        %1315 = vmatpush.bf16.msra.mxu0 0
        %1316 = vmatpush.bf16.msra.mxu0 0
        %1317 = vmatpush.bf16.msra.mxu0 %v1305
        %1318 = vmatpush.bf16.msra.mxu0 %v1304
        %1319 = vmatmul.bf16.gmra.mxu0 %v1309
        %v1320 = vpop.f32.mrf.mxu0
        %v1321 = vadd.f32 %v1294, %v1320
        %v1322 = vpop.f32.mrf.mxu0
        %1323 = vdwg.mxu0
        %v1324 = vmul.f32 %v1321, 0.5
        %v1325 = vmul.f32 %v1321, 0.044715
        %v1326 = vmul.f32 %v1325, %v1321
        %v1327 = vmul.f32 %v1326, %v1321
        %v1328 = vadd.f32 %v1321, %v1327
        %v1329 = vmul.f32 %v1328, 0.7978846
        %v1330 = vtanh.pop %v1329
        %v1331 = vadd.f32 %v1330, 1.0
        %v1332 = vmul.f32 %v1324, %v1331
        %v1333 = vpack.c.bf16 %v1332, %v1332
        %v1334 = vld [vmem:[%s821] sm:$0xf]
        %v1335 = vld [vmem:[%s821 + $0x4] sm:$0xf]
        %v1336 = vld [vmem:[%s821 + $0x8] sm:$0xf]
        %v1337 = vld [vmem:[%s821 + $0xc] sm:$0xf]
        %v1338 = vld [vmem:[%s821 + $0x10] sm:$0xf]
        %v1339 = vld [vmem:[%s821 + $0x14] sm:$0xf]
        %v1340 = vld [vmem:[%s821 + $0x18] sm:$0xf]
        %v1341 = vld [vmem:[%s821 + $0x1c] sm:$0xf]
        %v1342 = vld [vmem:[%s821 + $0x20] sm:$0xf]
        %v1343 = vld [vmem:[%s821 + $0x24] sm:$0xf]
        %v1344 = vld [vmem:[%s821 + $0x28] sm:$0xf]
        %v1345 = vld [vmem:[%s821 + $0x2c] sm:$0xf]
        %v1346 = vld [vmem:[%s821 + $0x30] sm:$0xf]
        %v1347 = vld [vmem:[%s821 + $0x34] sm:$0xf]
        %v1348 = vld [vmem:[%s821 + $0x38] sm:$0xf]
        %v1349 = vld [vmem:[%s821 + $0x3c] sm:$0xf]
        %v1350 = vld [vmem:[%s824] sm:$0x1]
        %v1352 = vperm.slane %v1350, 0
        %v1370 = vunpack.c.l.b16 %v1334
        %v1371 = vunpack.c.l.b16 %v1335
        %v1372 = vunpack.c.l.b16 %v1336
        %v1373 = vunpack.c.l.b16 %v1337
        %v1374 = vunpack.c.l.b16 %v1338
        %v1375 = vunpack.c.l.b16 %v1339
        %v1376 = vunpack.c.l.b16 %v1340
        %v1377 = vunpack.c.l.b16 %v1341
        %v1378 = vunpack.c.l.b16 %v1342
        %v1379 = vunpack.c.l.b16 %v1343
        %v1380 = vunpack.c.l.b16 %v1344
        %v1381 = vunpack.c.l.b16 %v1345
        %v1382 = vunpack.c.l.b16 %v1346
        %v1383 = vunpack.c.l.b16 %v1347
        %v1384 = vunpack.c.l.b16 %v1348
        %v1385 = vunpack.c.l.b16 %v1349
        %v1386 = vpack.c.b16 %v1371, %v1370
        %v1387 = vpack.c.b16 %v1373, %v1372
        %v1388 = vpack.c.b16 %v1375, %v1374
        %v1389 = vpack.c.b16 %v1377, %v1376
        %v1390 = vpack.c.b16 %v1379, %v1378
        %v1391 = vpack.c.b16 %v1381, %v1380
        %v1392 = vpack.c.b16 %v1383, %v1382
        %v1393 = vpack.c.b16 %v1385, %v1384
        %1402 = vmatpush.bf16.msra.mxu0 %v1393
        %1403 = vmatpush.bf16.msra.mxu0 %v1392
        %1404 = vmatpush.bf16.msra.mxu0 %v1391
        %1405 = vmatpush.bf16.msra.mxu0 %v1390
        %1406 = vmatpush.bf16.msra.mxu0 %v1389
        %1407 = vmatpush.bf16.msra.mxu0 %v1388
        %1408 = vmatpush.bf16.msra.mxu0 %v1387
        %1409 = vmatpush.bf16.msra.mxu0 %v1386
        %1410 = vmatmul.bf16.gmra.mxu0 %v1333
        %v1411 = vpop.f32.mrf.mxu0
        %v1412 = vadd.f32 %v1352, %v1411
        %v1413 = vpop.f32.mrf.mxu0
        %1414 = vdwg.mxu0
        %v1415 = vadd.f32 %v1254, %v1412
        %1416 = vst.msk [vmem:[%s757] sm:$0xff] %vm836, %v1415
        %s1417 = sand.u32 %s493, 1
        %s1418 = scalar_lea.sflag [#allocation3], %s1417
        %s1419 = sand.u32 %s493, 1
        %s1420 = smul.addr %s1419, 8
        %s1421 = scalar_lea.vmem [#allocation2], %s1420
        // Predicated region
        $region93: #{tpu_custom_call.1} parent=87 // pred_check
          %p1422 = pneg %p503
        $region94: #{tpu_custom_call.1} parent=87 // pred_check_branch
          %1424 = sbr.rel (%p1422) target = $region96
        $region95: #{tpu_custom_call.1} parent=87 // pred_region
          %1426 = vsyncadd %s1418, 0
          %s1427 = smul.addr %s35, 8
          %s1428 = scalar_lea.hbm %s17, %s1427
          %s1430 = sshll.u32 %s1421, 4
          %s1431 = int_to_ptr.vmem [resolvable:$true] %s1430
          %s1432 = sshll.u32 %s1428, 4
          %s1433 = int_to_ptr.hbm [resolvable:$true] %s1432
          %1435 = dma.vmem_to_hbm [thread:$0]  %s1431, 128, %s1433, %s1418
        $region96: #{tpu_custom_call.1} parent=87 // pred_fallthru
          _
      $region88: #{tpu_custom_call.1} parent=5 // pred_fallthru
        _
      %p1436 = scmp.le.s32.totalorder 2, %s26
      // Predicated region
      $region97: #{tpu_custom_call.1} parent=5 // pred_check
        %p1437 = pneg %p1436
      $region98: #{tpu_custom_call.1} parent=5 // pred_check_branch
        %1439 = sbr.rel (%p1437) target = $region100
      $region99: #{tpu_custom_call.1} parent=5 // pred_region
        %s1440 = ssub.s32 %s26, 2
        // Predicated region
        $region101: #{tpu_custom_call.1} parent=99 // pred_check
          %p1441 = pneg %p509
        $region102: #{tpu_custom_call.1} parent=99 // pred_check_branch
          %1443 = sbr.rel (%p1441) target = $region104
        $region103: #{tpu_custom_call.1} parent=99 // pred_region
          %s1444 = sand.u32 %s494, 1
          %s1445 = scalar_lea.sflag [#allocation3], %s1444
          %s1446 = sand.u32 %s494, 1
          %s1447 = smul.addr %s1446, 8
          %s1448 = scalar_lea.vmem [#allocation2], %s1447
          %1450 = dma.done %s1445, 128
        $region104: #{tpu_custom_call.1} parent=99 // pred_fallthru
          _
      $region100: #{tpu_custom_call.1} parent=5 // pred_fallthru
        _
    $region6: #{tpu_custom_call.1} parent=1 // loop_footer
      %s30 = sadd.s32 1, %s26
    $region7: #{tpu_custom_call.1} parent=1 // loop_footer_branch
      %25 = sbr.rel target = $region3
    $region8: #{tpu_custom_call.1} parent=1 // loop_exit
      _
    %1451 = vsyncpa [#allocation3], 1
    %s1452 = scalar_lea.sflag [#allocation3], 1
    %1453 = vsyncpa %s1452, 1

</llo_original>
